<compile_context>
chip_gen: v5e
topology: v5e:2x2
jax: 0.10.0
libtpu: 0.0.40
codegen_flags: <defaults>
</compile_context>

<pallas_src>
import functools

import jax
import jax.numpy as jnp
from jax.experimental import pallas as pl
from jax.experimental.pallas import tpu as pltpu


def _all_att_kernel(x_ref, w_all_ref, w_mk_ref, o_ref, proj_ref, y_ref, *,
                    cp, tk, approx_recip):
    """One (batch b, key-tile k) grid step.

    x_ref    : (Cp, N)   input, channel-first, N on lanes (constant over k)
    w_all_ref: (3Cp, Cp) packed [Wphi ; Wtheta ; Wmask@Wmv@Wg]   (constant)
    w_mk_ref : (TK, N)   row-tile k of the `mk` Linear weight
    o_ref    : (Cp, N)   output block (written on the last k step)
    proj_ref : (3Cp, N)  f32 scratch — phi / theta / g2 projections
    y_ref    : (Cp, N)   f32 scratch — accumulated attention output
    """
    k = pl.program_id(1)

    @pl.when(k == 0)
    def _init():
        # One fused MXU pass for all three projections (mv & mask folded in).
        proj_ref[...] = jnp.dot(w_all_ref[...], x_ref[...],
                                preferred_element_type=jnp.float32)
        y_ref[...] = jnp.zeros_like(y_ref)

    phi = proj_ref[0:cp, :]            # (Cp, N)  — sublane-aligned views
    theta = proj_ref[cp:2 * cp, :]     # (Cp, N)

    # Reassociated `mk` matmul:  tmp[k, c] = sum_j Wmk[k, j] * phi[c, j]
    w_mk = w_mk_ref[...].astype(jnp.float32)     # exact upcast of bf16 stream
    tmp = jax.lax.dot_general(w_mk, phi, (((1,), (1,)), ((), ())),
                              preferred_element_type=jnp.float32)   # (TK, Cp)
    # s[k, i] = sum_c tmp[k, c] * theta[c, i]  == row-tile of (attn @ Wmk^T)^T
    s = jnp.dot(tmp, theta, preferred_element_type=jnp.float32)     # (TK, N)

    # torch Softmax(dim=1) == softmax over the LAST (lane, i) axis of s;
    # fully local to each streamed k row -> no online softmax needed.
    m = jnp.max(s, axis=-1, keepdims=True)
    e = jnp.exp(s - m)
    d = jnp.sum(e, axis=-1, keepdims=True)
    p = e * pl.reciprocal(d, approx=approx_recip)                   # (TK, N)

    # y[c, i] += sum_{k in tile} g2[c, k] * p[k, i]
    k0 = pl.multiple_of(k * tk, tk)
    g_tile = proj_ref[2 * cp:3 * cp, pl.ds(k0, tk)]                 # (Cp, TK)
    y_ref[...] += jnp.dot(g_tile, p, preferred_element_type=jnp.float32)

    @pl.when(k == pl.num_programs(1) - 1)
    def _finalize():
        o_ref[...] = (y_ref[...] + x_ref[...]).astype(o_ref.dtype)


def _pick_key_tile(n):
    # Prefer multiples of 256 (clean on both v5e's 4x128^2 and v6e/v7x's
    # 2x256^2 MXUs); fall back to the full extent if nothing divides N.
    for tk in (512, 256, 128):
        if n % tk == 0:
            return tk
    return n


def _vmem_limit_bytes(est):
    try:
        phys = int(pltpu.get_tpu_info().vmem_capacity_bytes)
    except Exception:
        phys = 64 << 20                     # v7x per-TC physical (smallest)
    cap = max(32 << 20, phys - (12 << 20))  # leave compiler-scratch headroom
    return int(min(max(est, 32 << 20), cap))


def all_att(x_nchw, w_phi, w_theta, w_g, w_mv, w_mk, w_mask, *,
            mk_dtype=None, approx_recip=True):
    b, c, h, w = x_nchw.shape
    n = h * w

    # Fold the per-forward `mv` Linear AND conv_mask into the g projection.
    w_g_eff = jnp.dot(w_mask, jnp.dot(w_mv, w_g))                   # (C, C)

    # Pad channels to a multiple of 8 so packed-weight / projection slices are
    # (8,128)-tile aligned inside the kernel (padded rows/cols are zero).
    cp = ((c + 7) // 8) * 8

    def pad_cc(wm):
        return jnp.zeros((cp, cp), wm.dtype).at[:c, :c].set(wm)

    w_all = jnp.concatenate([pad_cc(w_phi), pad_cc(w_theta), pad_cc(w_g_eff)],
                            axis=0)                                  # (3Cp, Cp)

    # NCHW -> (B, Cp, N): pure reshape + zero channel pad, no transpose.
    x_cn = x_nchw.reshape(b, c, n)
    if cp != c:
        x_cn = jnp.pad(x_cn, ((0, 0), (0, cp - c), (0, 0)))

    if mk_dtype is not None:
        w_mk = w_mk.astype(mk_dtype)     # bf16 halves the dominant DMA stream

    tk = _pick_key_tile(n)
    nk = n // tk

    itemsize = jnp.dtype(x_cn.dtype).itemsize
    mk_itemsize = jnp.dtype(w_mk.dtype).itemsize
    est = (2 * 2 * cp * n * itemsize            # x + out blocks (double-buffered)
           + 2 * 3 * cp * cp * itemsize         # packed projection weights
           + 2 * tk * n * mk_itemsize           # streamed w_mk tiles (2 bufs)
           + (3 * cp * n + cp * n) * 4          # proj + y scratch
           + 4 * tk * n * 4                     # s / e / p live f32 temps
           + (2 << 20))

    cost = pl.CostEstimate(
        flops=2 * b * (3 * cp * cp * n + 3 * cp * n * n),
        transcendentals=b * n * n,
        bytes_accessed=(2 * b * cp * n * itemsize + 3 * cp * cp * itemsize
                        + b * n * n * mk_itemsize),
    )

    kernel = functools.partial(_all_att_kernel, cp=cp, tk=tk,
                               approx_recip=approx_recip)

    out_cn = pl.pallas_call(
        kernel,
        out_shape=jax.ShapeDtypeStruct((b, cp, n), x_nchw.dtype),
        grid_spec=pltpu.PrefetchScalarGridSpec(
            num_scalar_prefetch=0,
            grid=(b, nk),
            in_specs=[
                pl.BlockSpec((None, cp, n), lambda i, k: (i, 0, 0)),   # x
                pl.BlockSpec((3 * cp, cp), lambda i, k: (0, 0)),       # packed W
                pl.BlockSpec((tk, n), lambda i, k: (k, 0)),            # w_mk tile
            ],
            out_specs=pl.BlockSpec((None, cp, n), lambda i, k: (i, 0, 0)),
            scratch_shapes=[
                pltpu.VMEM((3 * cp, n), jnp.float32),    # phi | theta | g2
                pltpu.VMEM((cp, n), jnp.float32),        # y accumulator
            ],
        ),
        compiler_params=pltpu.CompilerParams(
            dimension_semantics=("parallel", "arbitrary"),  # B across v7x TCs
            vmem_limit_bytes=_vmem_limit_bytes(est),
        ),
        cost_estimate=cost,
    )(x_cn, w_all, w_mk)

    # (B, Cp, N) -> NCHW (drop padded channels): pure reshape, no transpose.
    return out_cn[:, :c, :].reshape(b, c, h, w)


def _reference_all_att(x_nchw, w_phi, w_theta, w_g, w_mv, w_mk, w_mask):
    """Pure-JAX reference mirroring the PyTorch All_att.forward exactly."""
    b, c, h, w = x_nchw.shape
    n = h * w

    def conv1x1(x_flat, wt):  # x_flat: (B, C_in, N), wt: (C_out, C_in)
        return jnp.einsum("oc,bcn->bon", wt, x_flat)

    x_flat = x_nchw.reshape(b, c, n)
    x_phi = conv1x1(x_flat, w_phi)                                  # (B, C, N)
    x_theta = jnp.transpose(conv1x1(x_flat, w_theta), (0, 2, 1))    # (B, N, C)
    x_g = jnp.transpose(conv1x1(x_flat, w_g), (0, 2, 1))            # (B, N, C)
    x_g = jnp.einsum("bnc,dc->bnd", x_g, w_mv)                      # mv Linear
    a = jnp.matmul(x_theta, x_phi)                                  # (B, N, N)
    a = jnp.einsum("bij,kj->bik", a, w_mk)                          # mk Linear
    a = jax.nn.softmax(a, axis=1)                                   # Softmax(dim=1)
    y = jnp.matmul(a, x_g)                                          # (B, N, C)
    y = jnp.transpose(y, (0, 2, 1)).reshape(b, c, h, w)
    mask = conv1x1(y.reshape(b, c, n), w_mask).reshape(b, c, h, w)
    return mask + x_nchw


if __name__ == "__main__":
    B, C, H, W = 2, 4, 16, 16
    N = H * W

    key = jax.random.PRNGKey(0)
    kx, kphi, ktheta, kg, kmv, kmk, kmask = jax.random.split(key, 7)

    x = jax.random.normal(kx, (B, C, H, W), dtype=jnp.float32)
    c_scale = 1.0 / jnp.sqrt(jnp.float32(C))
    n_scale = 1.0 / jnp.sqrt(jnp.float32(N))
    w_phi = jax.random.normal(kphi, (C, C), dtype=jnp.float32) * c_scale
    w_theta = jax.random.normal(ktheta, (C, C), dtype=jnp.float32) * c_scale
    w_g = jax.random.normal(kg, (C, C), dtype=jnp.float32) * c_scale
    # In the original module `mv` (Linear C->C) and `mk` (Linear N->N) are
    # re-instantiated with random init inside forward(); here they are treated
    # as fixed parameters passed to the kernel.
    w_mv = jax.random.normal(kmv, (C, C), dtype=jnp.float32) * c_scale
    w_mk = jax.random.normal(kmk, (N, N), dtype=jnp.float32) * n_scale
    w_mask = jax.random.normal(kmask, (C, C), dtype=jnp.float32) * c_scale

    ref = _reference_all_att(x, w_phi, w_theta, w_g, w_mv, w_mk, w_mask)

    # 1) Strict-accuracy config: exact reciprocal, f32 w_mk stream.
    out = all_att(x, w_phi, w_theta, w_g, w_mv, w_mk, w_mask,
                  mk_dtype=None, approx_recip=False)
    jax.block_until_ready(out)
    assert out.shape == (B, C, H, W)
    assert jnp.allclose(out, ref, atol=1e-4, rtol=1e-4), "mismatch vs reference"

    # 2) Fast config: EUP approx reciprocal + bf16 w_mk stream.  Checked
    #    against the reference evaluated with the same bf16-rounded w_mk so the
    #    only extra error is the ~1e-3-relative softmax normalization.
    out_fast = all_att(x, w_phi, w_theta, w_g, w_mv, w_mk, w_mask,
                       mk_dtype=jnp.bfloat16, approx_recip=True)
    jax.block_until_ready(out_fast)
    ref_fast = _reference_all_att(
        x, w_phi, w_theta, w_g, w_mv,
        w_mk.astype(jnp.bfloat16).astype(jnp.float32), w_mask)
    assert jnp.allclose(out_fast, ref_fast, atol=2e-2, rtol=2e-2), \
        "mismatch vs bf16-w_mk reference"

    print("KERNEL_OK")
</pallas_src>

<mosaic_0001>
module attributes {stable_mosaic.version = 11 : i64} {
  func.func @_all_att_kernel(%arg0: i32, %arg1: i32, %arg2: memref<1x8x256xf32, #tpu.memory_space<vmem>>, %arg3: memref<24x8xf32, #tpu.memory_space<vmem>>, %arg4: memref<256x256xf32, #tpu.memory_space<vmem>>, %arg5: memref<1x8x256xf32, #tpu.memory_space<vmem>>, %arg6: memref<24x256xf32, #tpu.memory_space<vmem>>, %arg7: memref<8x256xf32, #tpu.memory_space<vmem>>) attributes {dimension_semantics = [#tpu.dimension_semantics<parallel>, #tpu.dimension_semantics<arbitrary>], iteration_bounds = array<i64: 2, 1>, scalar_prefetch = 0 : i64, scratch_operands = 2 : i64, tpu.core_type = #tpu.core_type<tc>, window_params = [{transform_indices = @transform_0, window_bounds = array<i64: 1, 8, 256>}, {pipeline_mode = #tpu.pipeline_mode<synchronous>, transform_indices = @transform_1, window_bounds = array<i64: 24, 8>}, {transform_indices = @transform_2, window_bounds = array<i64: 256, 256>}, {transform_indices = @transform_3, window_bounds = array<i64: 1, 8, 256>}]} {
    %c0_i32 = arith.constant 0 : i32
    %0 = arith.cmpi eq, %arg1, %c0_i32 : i32
    %1 = arith.extui %0 : i1 to i32
    %c0_i32_0 = arith.constant 0 : i32
    %2 = arith.cmpi ne, %1, %c0_i32_0 : i32
    scf.if %2 {
      %c0_15 = arith.constant 0 : index
      %c0_16 = arith.constant 0 : index
      %29 = vector.load %arg3[%c0_15, %c0_16] : memref<24x8xf32, #tpu.memory_space<vmem>>, vector<24x8xf32>
      %c0_17 = arith.constant 0 : index
      %c0_18 = arith.constant 0 : index
      %c0_19 = arith.constant 0 : index
      %30 = vector.load %arg2[%c0_17, %c0_18, %c0_19] : memref<1x8x256xf32, #tpu.memory_space<vmem>>, vector<1x8x256xf32>
      %31 = vector.shape_cast %30 : vector<1x8x256xf32> to vector<8x256xf32>
      %cst_20 = arith.constant dense<0.000000e+00> : vector<24x256xf32>
      %32 = tpu.matmul %29, %31, %cst_20 {dimension_numbers = #tpu.dot_dimension_numbers<[1], [0], [0], [1], [0, 0, 1, 1], [], []>} : vector<24x8xf32>, vector<8x256xf32>, vector<24x256xf32> -> vector<24x256xf32>
      %c0_21 = arith.constant 0 : index
      %c0_22 = arith.constant 0 : index
      %33 = vector.load %arg6[%c0_21, %c0_22] : memref<24x256xf32, #tpu.memory_space<vmem>>, vector<24x256xf32>
      tpu.vector_store %arg6[%c0_21, %c0_22], %32 {strides = array<i32>} : memref<24x256xf32, #tpu.memory_space<vmem>>, vector<24x256xf32>,
      %cst_23 = arith.constant 0.000000e+00 : f32
      %34 = vector.broadcast %cst_23 : f32 to vector<8x256xf32>
      %c0_24 = arith.constant 0 : index
      %c0_25 = arith.constant 0 : index
      %35 = vector.load %arg7[%c0_24, %c0_25] : memref<8x256xf32, #tpu.memory_space<vmem>>, vector<8x256xf32>
      tpu.vector_store %arg7[%c0_24, %c0_25], %34 {strides = array<i32>} : memref<8x256xf32, #tpu.memory_space<vmem>>, vector<8x256xf32>,
    } else {
    }
    %c0 = arith.constant 0 : index
    %c0_1 = arith.constant 0 : index
    %3 = vector.load %arg6[%c0, %c0_1] : memref<24x256xf32, #tpu.memory_space<vmem>>, vector<8x256xf32>
    %c8 = arith.constant 8 : index
    %c0_2 = arith.constant 0 : index
    %4 = vector.load %arg6[%c8, %c0_2] : memref<24x256xf32, #tpu.memory_space<vmem>>, vector<8x256xf32>
    %c0_3 = arith.constant 0 : index
    %c0_4 = arith.constant 0 : index
    %5 = vector.load %arg4[%c0_3, %c0_4] : memref<256x256xf32, #tpu.memory_space<vmem>>, vector<256x256xf32>
    %cst = arith.constant dense<0.000000e+00> : vector<256x8xf32>
    %6 = tpu.matmul %5, %3, %cst {dimension_numbers = #tpu.dot_dimension_numbers<[1], [1], [0], [0], [0, 0, 1, 0], [], []>} : vector<256x256xf32>, vector<8x256xf32>, vector<256x8xf32> -> vector<256x8xf32>
    %cst_5 = arith.constant dense<0.000000e+00> : vector<256x256xf32>
    %7 = tpu.matmul %6, %4, %cst_5 {dimension_numbers = #tpu.dot_dimension_numbers<[1], [0], [0], [1], [0, 0, 1, 1], [], []>} : vector<256x8xf32>, vector<8x256xf32>, vector<256x256xf32> -> vector<256x256xf32>
    %cst_6 = arith.constant dense<0xFF800000> : vector<256xf32>
    %8 = vector.multi_reduction <maximumf>, %7, %cst_6 [1] : vector<256x256xf32> to vector<256xf32>
    %9 = vector.shape_cast %8 : vector<256xf32> to vector<256x1xf32>
    %10 = vector.broadcast %9 : vector<256x1xf32> to vector<256x256xf32>
    %11 = arith.subf %7, %10 : vector<256x256xf32>
    %12 = math.exp %11 : vector<256x256xf32>
    %cst_7 = arith.constant dense<0.000000e+00> : vector<256xf32>
    %13 = vector.multi_reduction <add>, %12, %cst_7 [1] : vector<256x256xf32> to vector<256xf32>
    %14 = vector.shape_cast %13 : vector<256xf32> to vector<256x1xf32>
    %15 = tpu.reciprocal %14 : vector<256x1xf32> -> vector<256x1xf32>
    %16 = vector.broadcast %15 : vector<256x1xf32> to vector<256x256xf32>
    %17 = arith.mulf %12, %16 : vector<256x256xf32>
    %c256_i32 = arith.constant 256 : i32
    %18 = arith.muli %arg1, %c256_i32 : i32
    %19 = tpu.assume_multiple %18, 256 : i32
    %c16 = arith.constant 16 : index
    %20 = arith.index_cast %19 : i32 to index
    %21 = vector.load %arg6[%c16, %20] : memref<24x256xf32, #tpu.memory_space<vmem>>, vector<8x256xf32>
    %c0_8 = arith.constant 0 : index
    %c0_9 = arith.constant 0 : index
    %22 = vector.load %arg7[%c0_8, %c0_9] : memref<8x256xf32, #tpu.memory_space<vmem>>, vector<8x256xf32>
    %cst_10 = arith.constant dense<0.000000e+00> : vector<8x256xf32>
    %23 = tpu.matmul %21, %17, %cst_10 {dimension_numbers = #tpu.dot_dimension_numbers<[1], [0], [0], [1], [0, 0, 1, 1], [], []>} : vector<8x256xf32>, vector<256x256xf32>, vector<8x256xf32> -> vector<8x256xf32>
    %24 = arith.addf %22, %23 : vector<8x256xf32>
    %c0_11 = arith.constant 0 : index
    %c0_12 = arith.constant 0 : index
    %25 = vector.load %arg7[%c0_11, %c0_12] : memref<8x256xf32, #tpu.memory_space<vmem>>, vector<8x256xf32>
    tpu.vector_store %arg7[%c0_11, %c0_12], %24 {strides = array<i32>} : memref<8x256xf32, #tpu.memory_space<vmem>>, vector<8x256xf32>,
    %c0_i32_13 = arith.constant 0 : i32
    %26 = arith.cmpi eq, %arg1, %c0_i32_13 : i32
    %27 = arith.extui %26 : i1 to i32
    %c0_i32_14 = arith.constant 0 : i32
    %28 = arith.cmpi ne, %27, %c0_i32_14 : i32
    scf.if %28 {
      %c0_15 = arith.constant 0 : index
      %c0_16 = arith.constant 0 : index
      %29 = vector.load %arg7[%c0_15, %c0_16] : memref<8x256xf32, #tpu.memory_space<vmem>>, vector<8x256xf32>
      %c0_17 = arith.constant 0 : index
      %c0_18 = arith.constant 0 : index
      %c0_19 = arith.constant 0 : index
      %30 = vector.load %arg2[%c0_17, %c0_18, %c0_19] : memref<1x8x256xf32, #tpu.memory_space<vmem>>, vector<1x8x256xf32>
      %31 = vector.shape_cast %30 : vector<1x8x256xf32> to vector<8x256xf32>
      %32 = arith.addf %29, %31 : vector<8x256xf32>
      %c0_20 = arith.constant 0 : index
      %c0_21 = arith.constant 0 : index
      %c0_22 = arith.constant 0 : index
      %33 = vector.load %arg5[%c0_20, %c0_21, %c0_22] : memref<1x8x256xf32, #tpu.memory_space<vmem>>, vector<1x8x256xf32>
      %34 = vector.shape_cast %33 : vector<1x8x256xf32> to vector<8x256xf32>
      %35 = vector.shape_cast %32 : vector<8x256xf32> to vector<1x8x256xf32>
      tpu.vector_store %arg5[%c0_20, %c0_21, %c0_22], %35 {strides = array<i32>} : memref<1x8x256xf32, #tpu.memory_space<vmem>>, vector<1x8x256xf32>,
    } else {
    }
    return
  }
  func.func @transform_0(%arg0: i32, %arg1: i32) -> (i32, i32, i32) {
    %c0_i32 = arith.constant 0 : i32
    %c0_i32_0 = arith.constant 0 : i32
    %c0_i32_1 = arith.constant 0 : i32
    return %arg0, %c0_i32, %c0_i32_0 : i32, i32, i32
  }
  func.func @transform_1(%arg0: i32, %arg1: i32) -> (i32, i32) {
    %c0_i32 = arith.constant 0 : i32
    %c0_i32_0 = arith.constant 0 : i32
    %c0_i32_1 = arith.constant 0 : i32
    return %c0_i32, %c0_i32_0 : i32, i32
  }
  func.func @transform_2(%arg0: i32, %arg1: i32) -> (i32, i32) {
    %c0_i32 = arith.constant 0 : i32
    %c0_i32_0 = arith.constant 0 : i32
    return %arg1, %c0_i32 : i32, i32
  }
  func.func @transform_3(%arg0: i32, %arg1: i32) -> (i32, i32, i32) {
    %c0_i32 = arith.constant 0 : i32
    %c0_i32_0 = arith.constant 0 : i32
    %c0_i32_1 = arith.constant 0 : i32
    return %arg0, %c0_i32, %c0_i32_0 : i32, i32, i32
  }
}

</mosaic_0001>

<llo_original>
// kernel: tpu_custom_call.1
$region0: #{tpu_custom_call.1}
  #allocation0 [shape = 'u32[]', space=smem, size = 0x4, offset = 0x4, fixed_abs, tag = 'smem constant byte address 0x4 - core index']
  #allocation1 [shape = 'u32[72,128]{1,0:T(1,128)}', space=vmem, size = 0x9000, scoped, tag = 'internal scratch']
  #allocation2 [shape = 'f32[24,256]{1,0:T(8,128)}', space=vmem, size = 0x6000, scoped, tag = 'scratch operand']
  #allocation3 [shape = 'f32[8,256]{1,0:T(8,128)}', space=vmem, size = 0x2000, scoped, tag = 'scratch operand']
  %s0 = inlined_call_operand.vmem [shape: f32[2,8,256], index: 0, kind: input, shape index: {}]
  %s1 = inlined_call_operand.vmem [shape: f32[24,8], index: 1, kind: input, shape index: {}]
  %s2 = inlined_call_operand.hbm [shape: f32[256,256], index: 2, kind: input, shape index: {}]
  %s3 = inlined_call_operand.hbm [shape: f32[2,8,256], index: 3, kind: output, shape index: {}]
  %s4 = sld [smem:[#allocation0]]
  $region57: #{tpu_custom_call.1} parent=0
    _
  %s6 = ssub.s32 1, %s4
  %s7 = scalar_select 0, %s6, %s4
  $region1: #{tpu_custom_call.1} parent=0
    #allocation4 [shape = 'u8[262144]{0}', space=vmem, size = 0x40000, scoped, tag = 'input window, operand 2, single buffered']
    #allocation5 [shape = 's32[2]{0}', space=sflag, size = 0x8, scoped, tag = 'scoped memory for tpu_custom_call.1']
    #allocation6 [shape = 's32[2]{0}', space=sflag, size = 0x8, scoped, tag = 'scoped memory for tpu_custom_call.1']
    #allocation7 [shape = 'u8[16384]{0}', space=vmem, size = 0x4000, scoped, tag = 'output window, operand 0']
    %8 = vsyncpa [#allocation5], 0
    %9 = vsyncpa [#allocation6], 0
    %s10 = scalar_lea.sflag [#allocation6], 1
    %11 = vsyncpa %s10, 0
    loop: start=0, step=1, limit=4
    $region2: #{tpu_custom_call.1} parent=1 // loop_pre_header
      _
    $region3: #{tpu_custom_call.1} parent=1 // loop_header
      %s13 = sphi 0, %s17
      %p14 = scmp.ge.s32.totalorder %s13, 4
      %s20 = sphi 0, %s32
      %s21 = sphi 0, %s28
      %s22 = sphi 0, %s20
      %s23 = sphi 0, %s21
      %s24 = sphi 0, %s22
      %s25 = sphi 0, %s23
      %s35 = sphi 0, %s37
      %s38 = sphi 0, %s35
      %s39 = sphi 0, %s38
      %s55 = sphi 0, %s39
      %s59 = sphi 0, %s59
      %s61 = sphi 0, %s59
      %s62 = sphi 0, %s61
      %s76 = sphi 0, %s62
      %s82 = sphi 0, %s84
      %s85 = sphi 0, %s82
      %s86 = sphi 0, %s85
      %s102 = sphi 0, %s86
      %s108 = sphi 0, %s110
      %s111 = sphi 0, %s108
      %s112 = sphi 0, %s111
      %s128 = sphi 0, %s112
    $region4: #{tpu_custom_call.1} parent=1 // loop_header_branch
      %16 = sbr.rel (%p14) target = $region8
    $region5: #{tpu_custom_call.1} parent=1 // loop_body
      %s18 = ssub.s32 %s13, 1
      %s19 = ssub.s32 %s13, 2
      %s26 = sadd.s32 1, %s21
      %p27 = scmp.ge.s32.totalorder %s26, 1
      %s28 = scalar_select %p27, 0, %s26
      %s29 = sadd.s32 1, %s20
      %s30 = scalar_select %p27, %s29, %s20
      %p31 = scmp.ge.s32.totalorder %s30, 2
      %s32 = scalar_select %p31, 0, %s30
      %s33 = ssub.s32 %s20, %s32
      %p34 = scmp.eq.s32.totalorder %s33, 0
      %s36 = sadd.s32 %s35, 1
      %s37 = scalar_select %p34, %s35, %s36
      %p40 = pneg %p34
      %p41 = scmp.eq.s32.totalorder %s13, 1
      %p42 = por %p40, %p41
      %p43 = scmp.ne.s32.totalorder %s35, %s38
      %p44 = scmp.eq.s32.totalorder %s13, 0
      %p45 = por %p43, %p44
      %p46 = scmp.ne.s32.totalorder %s35, %s38
      %p47 = scmp.eq.s32.totalorder %s18, 1
      %p48 = por %p46, %p47
      %p49 = scmp.ne.s32.totalorder %s38, %s39
      %p50 = scmp.eq.s32.totalorder %s18, 0
      %p51 = por %p49, %p50
      %p52 = scmp.ne.s32.totalorder %s38, %s39
      %p53 = scmp.eq.s32.totalorder %s19, 1
      %p54 = por %p52, %p53
      %p56 = scmp.ne.s32.totalorder %s39, %s55
      %p57 = scmp.eq.s32.totalorder %s19, 0
      %p58 = por %p56, %p57
      %s60 = sadd.s32 %s59, 1
      %p63 = scmp.eq.s32.totalorder %s13, 1
      %p64 = scmp.ne.s32.totalorder %s59, %s61
      %p65 = scmp.eq.s32.totalorder %s13, 0
      %p66 = por %p64, %p65
      %p67 = scmp.ne.s32.totalorder %s59, %s61
      %p68 = scmp.eq.s32.totalorder %s18, 1
      %p69 = por %p67, %p68
      %p70 = scmp.ne.s32.totalorder %s61, %s62
      %p71 = scmp.eq.s32.totalorder %s18, 0
      %p72 = por %p70, %p71
      %p73 = scmp.ne.s32.totalorder %s61, %s62
      %p74 = scmp.eq.s32.totalorder %s19, 1
      %p75 = por %p73, %p74
      %p77 = scmp.ne.s32.totalorder %s62, %s76
      %p78 = scmp.eq.s32.totalorder %s19, 0
      %p79 = por %p77, %p78
      %s80 = ssub.s32 %s21, %s28
      %p81 = scmp.eq.s32.totalorder %s80, 0
      %s83 = sadd.s32 %s82, 1
      %s84 = scalar_select %p81, %s82, %s83
      %p87 = pneg %p81
      %p88 = scmp.eq.s32.totalorder %s13, 1
      %p89 = por %p87, %p88
      %p90 = scmp.ne.s32.totalorder %s82, %s85
      %p91 = scmp.eq.s32.totalorder %s13, 0
      %p92 = por %p90, %p91
      %p93 = scmp.ne.s32.totalorder %s82, %s85
      %p94 = scmp.eq.s32.totalorder %s18, 1
      %p95 = por %p93, %p94
      %p96 = scmp.ne.s32.totalorder %s85, %s86
      %p97 = scmp.eq.s32.totalorder %s18, 0
      %p98 = por %p96, %p97
      %p99 = scmp.ne.s32.totalorder %s85, %s86
      %p100 = scmp.eq.s32.totalorder %s19, 1
      %p101 = por %p99, %p100
      %p103 = scmp.ne.s32.totalorder %s86, %s102
      %p104 = scmp.eq.s32.totalorder %s19, 0
      %p105 = por %p103, %p104
      %s106 = ssub.s32 %s20, %s32
      %p107 = scmp.eq.s32.totalorder %s106, 0
      %s109 = sadd.s32 %s108, 1
      %s110 = scalar_select %p107, %s108, %s109
      %p113 = pneg %p107
      %p114 = scmp.eq.s32.totalorder %s13, 1
      %p115 = por %p113, %p114
      %p116 = scmp.ne.s32.totalorder %s108, %s111
      %p117 = scmp.eq.s32.totalorder %s13, 0
      %p118 = por %p116, %p117
      %p119 = scmp.ne.s32.totalorder %s108, %s111
      %p120 = scmp.eq.s32.totalorder %s18, 1
      %p121 = por %p119, %p120
      %p122 = scmp.ne.s32.totalorder %s111, %s112
      %p123 = scmp.eq.s32.totalorder %s18, 0
      %p124 = por %p122, %p123
      %p125 = scmp.ne.s32.totalorder %s111, %s112
      %p126 = scmp.eq.s32.totalorder %s19, 1
      %p127 = por %p125, %p126
      %p129 = scmp.ne.s32.totalorder %s112, %s128
      %p130 = scmp.eq.s32.totalorder %s19, 0
      %p131 = por %p129, %p130
      %p132 = scmp.le.s32.totalorder 1, %s13
      %p133 = scmp.lt.s32.totalorder %s13, 3
      %p134 = pnand %p132, %p133
      %p135 = pneg %p134
      // Predicated region
      $region9: #{tpu_custom_call.1} parent=5 // pred_check
        _
      $region10: #{tpu_custom_call.1} parent=5 // pred_check_branch
        %137 = sbr.rel (%p134) target = $region12
      $region11: #{tpu_custom_call.1} parent=5 // pred_region
        %s138 = ssub.s32 %s13, 1
        // Predicated region
        $region13: #{tpu_custom_call.1} parent=11 // pred_check
          %p139 = pneg %p72
        $region14: #{tpu_custom_call.1} parent=11 // pred_check_branch
          %141 = sbr.rel (%p139) target = $region16
        $region15: #{tpu_custom_call.1} parent=11 // pred_region
          _
        $region16: #{tpu_custom_call.1} parent=11 // pred_fallthru
          _
        // Predicated region
        $region17: #{tpu_custom_call.1} parent=11 // pred_check
          %p142 = pneg %p98
        $region18: #{tpu_custom_call.1} parent=11 // pred_check_branch
          %144 = sbr.rel (%p142) target = $region20
        $region19: #{tpu_custom_call.1} parent=11 // pred_region
          %s145 = smul.u32 32, %s23
          %147 = vsyncadd [#allocation5], 0
          %s148 = smul.addr %s145, 2
          %s149 = smul.addr %s148, 8
          %s150 = scalar_lea.hbm %s2, %s149
          %s151 = sshll.u32 %s150, 4
          %s152 = int_to_ptr.hbm [resolvable:$true] %s151
          %s153 = sshll.u32 [#allocation4], 4
          %s154 = int_to_ptr.vmem [resolvable:$true] %s153
          %159 = dma.hbm_to_vmem [thread:$0]  %s152, 8192, %s154, [#allocation5], 256, 256, 16
        $region20: #{tpu_custom_call.1} parent=11 // pred_fallthru
          _
      $region12: #{tpu_custom_call.1} parent=5 // pred_fallthru
        _
      %p160 = scmp.lt.s32.totalorder %s13, 2
      // Predicated region
      $region21: #{tpu_custom_call.1} parent=5 // pred_check
        %p161 = pneg %p160
      $region22: #{tpu_custom_call.1} parent=5 // pred_check_branch
        %163 = sbr.rel (%p161) target = $region24
      $region23: #{tpu_custom_call.1} parent=5 // pred_region
        // Predicated region
        $region25: #{tpu_custom_call.1} parent=23 // pred_check
          %p164 = pneg %p45
        $region26: #{tpu_custom_call.1} parent=23 // pred_check_branch
          %166 = sbr.rel (%p164) target = $region28
        $region27: #{tpu_custom_call.1} parent=23 // pred_region
          %p167 = scmp.lt.s32.totalorder %s20, 1
          %s168 = scalar_select %p167, %s20, 1
          %s169 = smul.addr %s168, 2
          %s170 = smul.addr %s169, 8
          %s171 = scalar_lea.vmem %s0, %s170
        $region28: #{tpu_custom_call.1} parent=23 // pred_fallthru
          _
      $region24: #{tpu_custom_call.1} parent=5 // pred_fallthru
        _
      %p172 = scmp.le.s32.totalorder 1, %s13
      %p173 = scmp.lt.s32.totalorder %s13, 3
      %p174 = pnand %p172, %p173
      %p175 = pneg %p174
      // Predicated region
      $region29: #{tpu_custom_call.1} parent=5 // pred_check
        _
      $region30: #{tpu_custom_call.1} parent=5 // pred_check_branch
        %177 = sbr.rel (%p174) target = $region32
      $region31: #{tpu_custom_call.1} parent=5 // pred_region
        %s178 = ssub.s32 %s13, 1
        // Predicated region
        $region33: #{tpu_custom_call.1} parent=31 // pred_check
          %p179 = pneg %p98
        $region34: #{tpu_custom_call.1} parent=31 // pred_check_branch
          %181 = sbr.rel (%p179) target = $region36
        $region35: #{tpu_custom_call.1} parent=31 // pred_region
          %183 = dma.done [#allocation5], 8192
        $region36: #{tpu_custom_call.1} parent=31 // pred_fallthru
          _
        %p184 = scmp.lt.s32.totalorder %s22, 1
        %s185 = scalar_select %p184, %s22, 1
        %s186 = smul.addr %s185, 2
        %s187 = smul.addr %s186, 8
        %s188 = scalar_lea.vmem %s0, %s187
        %p189 = pneg %p51
        %p190 = pneg %p48
        %p191 = pneg %p72
        %p192 = pneg %p69
        %p193 = pneg %p98
        %p194 = pneg %p95
        %p195 = pneg %p124
        %p196 = pneg %p121
        %s197 = sand.u32 %s111, 1
        %s198 = scalar_lea.sflag [#allocation6], %s197
        %s199 = sand.u32 %s111, 1
        %s200 = smul.addr %s199, 16
        %s201 = scalar_lea.vmem [#allocation7], %s200
        %p202 = scmp.lt.s32.totalorder %s22, 1
        %s203 = scalar_select %p202, %s22, 1
        %s204 = smul.addr %s203, 2
        %s205 = smul.addr %s204, 8
        %s206 = scalar_lea.vmem %s0, %s205
        %s207 = smul.u32 32, %s23
        %p208 = scmp.eq.s32.totalorder %s23, 0
        // Predicated region
        $region37: #{tpu_custom_call.1} parent=31 // pred_check
          %p209 = pneg %p208
        $region38: #{tpu_custom_call.1} parent=31 // pred_check_branch
          %211 = sbr.rel (%p209) target = $region40
        $region39: #{tpu_custom_call.1} parent=31 // pred_region
          %v212 = vld [vmem:[%s1] sm:$0xff]
          %v213 = vld [vmem:[%s1 + $0x8] sm:$0xff]
          %v214 = vld [vmem:[%s1 + $0x10] sm:$0xff]
          %v215 = vld [vmem:[%s206] sm:$0xff]
          %v216 = vld [vmem:[%s206 + $0x8] sm:$0xff]
          %vm217 = vcmask 64512
          %v219 = vsel %vm217, %v212, 0
          %v222 = vsel %vm217, %v213, 0
          %v225 = vsel %vm217, %v214, 0
          %227 = vmatpush.msra.mxu0 0.0
          %228 = vmatpush.msra.mxu0 0.0
          %229 = vmatpush.msra.mxu0 0.0
          %230 = vmatpush.msra.mxu0 0.0
          %231 = vmatpush.msra.mxu0 0.0
          %232 = vmatpush.msra.mxu0 0.0
          %233 = vmatpush.msra.mxu0 0.0
          %234 = vmatpush.msra.mxu0 0.0
          %235 = vmatpush.msra.mxu0 0.0
          %236 = vmatpush.msra.mxu0 0.0
          %237 = vmatpush.msra.mxu0 0.0
          %238 = vmatpush.msra.mxu0 0.0
          %239 = vmatpush.msra.mxu0 0.0
          %240 = vmatpush.msra.mxu0 0.0
          %241 = vmatpush.msra.mxu0 0.0
          %242 = vmatpush.msra.mxu0 %v215
          %243 = vmatmul.f32.gmra.mxu0 %v219
          %v244 = vpop.f32.mrf.mxu0
          %v245 = vadd.f32 0.0, %v244
          %246 = vmatmul.f32.gmra.mxu0 %v222
          %v247 = vpop.f32.mrf.mxu0
          %v248 = vadd.f32 0.0, %v247
          %249 = vmatmul.f32.gmra.mxu0 %v225
          %v250 = vpop.f32.mrf.mxu0
          %v251 = vadd.f32 0.0, %v250
          %252 = vdwg.mxu0
          %253 = vmatpush.msra.mxu0 0.0
          %254 = vmatpush.msra.mxu0 0.0
          %255 = vmatpush.msra.mxu0 0.0
          %256 = vmatpush.msra.mxu0 0.0
          %257 = vmatpush.msra.mxu0 0.0
          %258 = vmatpush.msra.mxu0 0.0
          %259 = vmatpush.msra.mxu0 0.0
          %260 = vmatpush.msra.mxu0 0.0
          %261 = vmatpush.msra.mxu0 0.0
          %262 = vmatpush.msra.mxu0 0.0
          %263 = vmatpush.msra.mxu0 0.0
          %264 = vmatpush.msra.mxu0 0.0
          %265 = vmatpush.msra.mxu0 0.0
          %266 = vmatpush.msra.mxu0 0.0
          %267 = vmatpush.msra.mxu0 0.0
          %268 = vmatpush.msra.mxu0 %v216
          %269 = vmatmul.f32.gmra.mxu0 %v219
          %v270 = vpop.f32.mrf.mxu0
          %v271 = vadd.f32 0.0, %v270
          %272 = vmatmul.f32.gmra.mxu0 %v222
          %v273 = vpop.f32.mrf.mxu0
          %v274 = vadd.f32 0.0, %v273
          %275 = vmatmul.f32.gmra.mxu0 %v225
          %v276 = vpop.f32.mrf.mxu0
          %v277 = vadd.f32 0.0, %v276
          %278 = vdwg.mxu0
          %279 = vst [vmem:[#allocation2] sm:$0xff] %v245
          %280 = vst [vmem:[#allocation2 + $0x8] sm:$0xff] %v271
          %281 = vst [vmem:[#allocation2 + $0x10] sm:$0xff] %v248
          %282 = vst [vmem:[#allocation2 + $0x18] sm:$0xff] %v274
          %283 = vst [vmem:[#allocation2 + $0x20] sm:$0xff] %v251
          %284 = vst [vmem:[#allocation2 + $0x28] sm:$0xff] %v277
          %285 = vst [vmem:[#allocation3] sm:$0xff] 0.0
          %286 = vst [vmem:[#allocation3 + $0x8] sm:$0xff] 0.0
        $region40: #{tpu_custom_call.1} parent=31 // pred_fallthru
          _
        %v287 = vld [vmem:[#allocation2] sm:$0xff]
        %v288 = vld [vmem:[#allocation2 + $0x8] sm:$0xff]
        %v289 = vld [vmem:[#allocation2 + $0x10] sm:$0xff]
        %v290 = vld [vmem:[#allocation2 + $0x18] sm:$0xff]
        %v291 = vld [vmem:[#allocation4] sm:$0xff]
        %v292 = vld [vmem:[#allocation4 + $0x8] sm:$0xff]
        %v293 = vld [vmem:[#allocation4 + $0x10] sm:$0xff]
        %v294 = vld [vmem:[#allocation4 + $0x18] sm:$0xff]
        %v295 = vld [vmem:[#allocation4 + $0x20] sm:$0xff]
        %v296 = vld [vmem:[#allocation4 + $0x28] sm:$0xff]
        %v297 = vld [vmem:[#allocation4 + $0x30] sm:$0xff]
        %v298 = vld [vmem:[#allocation4 + $0x38] sm:$0xff]
        %v299 = vld [vmem:[#allocation4 + $0x40] sm:$0xff]
        %v300 = vld [vmem:[#allocation4 + $0x48] sm:$0xff]
        %v301 = vld [vmem:[#allocation4 + $0x50] sm:$0xff]
        %v302 = vld [vmem:[#allocation4 + $0x58] sm:$0xff]
        %v303 = vld [vmem:[#allocation4 + $0x60] sm:$0xff]
        %v304 = vld [vmem:[#allocation4 + $0x68] sm:$0xff]
        %v305 = vld [vmem:[#allocation4 + $0x70] sm:$0xff]
        %v306 = vld [vmem:[#allocation4 + $0x78] sm:$0xff]
        %v307 = vld [vmem:[#allocation4 + $0x80] sm:$0xff]
        %v308 = vld [vmem:[#allocation4 + $0x88] sm:$0xff]
        %v309 = vld [vmem:[#allocation4 + $0x90] sm:$0xff]
        %v310 = vld [vmem:[#allocation4 + $0x98] sm:$0xff]
        %v311 = vld [vmem:[#allocation4 + $0xa0] sm:$0xff]
        %v312 = vld [vmem:[#allocation4 + $0xa8] sm:$0xff]
        %v313 = vld [vmem:[#allocation4 + $0xb0] sm:$0xff]
        %v314 = vld [vmem:[#allocation4 + $0xb8] sm:$0xff]
        %v315 = vld [vmem:[#allocation4 + $0xc0] sm:$0xff]
        %v316 = vld [vmem:[#allocation4 + $0xc8] sm:$0xff]
        %v317 = vld [vmem:[#allocation4 + $0xd0] sm:$0xff]
        %v318 = vld [vmem:[#allocation4 + $0xd8] sm:$0xff]
        %v319 = vld [vmem:[#allocation4 + $0xe0] sm:$0xff]
        %v320 = vld [vmem:[#allocation4 + $0xe8] sm:$0xff]
        %v321 = vld [vmem:[#allocation4 + $0xf0] sm:$0xff]
        %v322 = vld [vmem:[#allocation4 + $0xf8] sm:$0xff]
        %v323 = vld [vmem:[#allocation4 + $0x100] sm:$0xff]
        %v324 = vld [vmem:[#allocation4 + $0x108] sm:$0xff]
        %v325 = vld [vmem:[#allocation4 + $0x110] sm:$0xff]
        %v326 = vld [vmem:[#allocation4 + $0x118] sm:$0xff]
        %v327 = vld [vmem:[#allocation4 + $0x120] sm:$0xff]
        %v328 = vld [vmem:[#allocation4 + $0x128] sm:$0xff]
        %v329 = vld [vmem:[#allocation4 + $0x130] sm:$0xff]
        %v330 = vld [vmem:[#allocation4 + $0x138] sm:$0xff]
        %v331 = vld [vmem:[#allocation4 + $0x140] sm:$0xff]
        %v332 = vld [vmem:[#allocation4 + $0x148] sm:$0xff]
        %v333 = vld [vmem:[#allocation4 + $0x150] sm:$0xff]
        %v334 = vld [vmem:[#allocation4 + $0x158] sm:$0xff]
        %v335 = vld [vmem:[#allocation4 + $0x160] sm:$0xff]
        %v336 = vld [vmem:[#allocation4 + $0x168] sm:$0xff]
        %v337 = vld [vmem:[#allocation4 + $0x170] sm:$0xff]
        %v338 = vld [vmem:[#allocation4 + $0x178] sm:$0xff]
        %v339 = vld [vmem:[#allocation4 + $0x180] sm:$0xff]
        %v340 = vld [vmem:[#allocation4 + $0x188] sm:$0xff]
        %v341 = vld [vmem:[#allocation4 + $0x190] sm:$0xff]
        %v342 = vld [vmem:[#allocation4 + $0x198] sm:$0xff]
        %v343 = vld [vmem:[#allocation4 + $0x1a0] sm:$0xff]
        %v344 = vld [vmem:[#allocation4 + $0x1a8] sm:$0xff]
        %v345 = vld [vmem:[#allocation4 + $0x1b0] sm:$0xff]
        %v346 = vld [vmem:[#allocation4 + $0x1b8] sm:$0xff]
        %v347 = vld [vmem:[#allocation4 + $0x1c0] sm:$0xff]
        %v348 = vld [vmem:[#allocation4 + $0x1c8] sm:$0xff]
        %v349 = vld [vmem:[#allocation4 + $0x1d0] sm:$0xff]
        %v350 = vld [vmem:[#allocation4 + $0x1d8] sm:$0xff]
        %v351 = vld [vmem:[#allocation4 + $0x1e0] sm:$0xff]
        %v352 = vld [vmem:[#allocation4 + $0x1e8] sm:$0xff]
        %v353 = vld [vmem:[#allocation4 + $0x1f0] sm:$0xff]
        %v354 = vld [vmem:[#allocation4 + $0x1f8] sm:$0xff]
        %355 = vmatpush.xpose.msra.mxu0 0.0
        %356 = vmatpush.xpose.msra.mxu0 0.0
        %357 = vmatpush.xpose.msra.mxu0 0.0
        %358 = vmatpush.xpose.msra.mxu0 0.0
        %359 = vmatpush.xpose.msra.mxu0 0.0
        %360 = vmatpush.xpose.msra.mxu0 0.0
        %361 = vmatpush.xpose.msra.mxu0 0.0
        %362 = vmatpush.xpose.msra.mxu0 0.0
        %363 = vmatpush.xpose.msra.mxu0 0.0
        %364 = vmatpush.xpose.msra.mxu0 0.0
        %365 = vmatpush.xpose.msra.mxu0 0.0
        %366 = vmatpush.xpose.msra.mxu0 0.0
        %367 = vmatpush.xpose.msra.mxu0 0.0
        %368 = vmatpush.xpose.msra.mxu0 0.0
        %369 = vmatpush.xpose.msra.mxu0 0.0
        %370 = vmatpush.xpose.msra.mxu0 %v287
        %371 = vmatmul.f32.gmra.mxu0 %v291
        %v372 = vpop.f32.mrf.mxu0
        %v373 = vadd.f32 0.0, %v372
        %374 = vmatmul.f32.gmra.mxu0 %v293
        %v375 = vpop.f32.mrf.mxu0
        %v376 = vadd.f32 0.0, %v375
        %377 = vmatmul.f32.gmra.mxu0 %v295
        %v378 = vpop.f32.mrf.mxu0
        %v379 = vadd.f32 0.0, %v378
        %380 = vmatmul.f32.gmra.mxu0 %v297
        %v381 = vpop.f32.mrf.mxu0
        %v382 = vadd.f32 0.0, %v381
        %383 = vmatmul.f32.gmra.mxu0 %v299
        %v384 = vpop.f32.mrf.mxu0
        %v385 = vadd.f32 0.0, %v384
        %386 = vmatmul.f32.gmra.mxu0 %v301
        %v387 = vpop.f32.mrf.mxu0
        %v388 = vadd.f32 0.0, %v387
        %389 = vmatmul.f32.gmra.mxu0 %v303
        %v390 = vpop.f32.mrf.mxu0
        %v391 = vadd.f32 0.0, %v390
        %392 = vmatmul.f32.gmra.mxu0 %v305
        %v393 = vpop.f32.mrf.mxu0
        %v394 = vadd.f32 0.0, %v393
        %395 = vmatmul.f32.gmra.mxu0 %v307
        %v396 = vpop.f32.mrf.mxu0
        %v397 = vadd.f32 0.0, %v396
        %398 = vmatmul.f32.gmra.mxu0 %v309
        %v399 = vpop.f32.mrf.mxu0
        %v400 = vadd.f32 0.0, %v399
        %401 = vmatmul.f32.gmra.mxu0 %v311
        %v402 = vpop.f32.mrf.mxu0
        %v403 = vadd.f32 0.0, %v402
        %404 = vmatmul.f32.gmra.mxu0 %v313
        %v405 = vpop.f32.mrf.mxu0
        %v406 = vadd.f32 0.0, %v405
        %407 = vmatmul.f32.gmra.mxu0 %v315
        %v408 = vpop.f32.mrf.mxu0
        %v409 = vadd.f32 0.0, %v408
        %410 = vmatmul.f32.gmra.mxu0 %v317
        %v411 = vpop.f32.mrf.mxu0
        %v412 = vadd.f32 0.0, %v411
        %413 = vmatmul.f32.gmra.mxu0 %v319
        %v414 = vpop.f32.mrf.mxu0
        %v415 = vadd.f32 0.0, %v414
        %416 = vmatmul.f32.gmra.mxu0 %v321
        %v417 = vpop.f32.mrf.mxu0
        %v418 = vadd.f32 0.0, %v417
        %419 = vmatmul.f32.gmra.mxu0 %v323
        %v420 = vpop.f32.mrf.mxu0
        %v421 = vadd.f32 0.0, %v420
        %422 = vmatmul.f32.gmra.mxu0 %v325
        %v423 = vpop.f32.mrf.mxu0
        %v424 = vadd.f32 0.0, %v423
        %425 = vmatmul.f32.gmra.mxu0 %v327
        %v426 = vpop.f32.mrf.mxu0
        %v427 = vadd.f32 0.0, %v426
        %428 = vmatmul.f32.gmra.mxu0 %v329
        %v429 = vpop.f32.mrf.mxu0
        %v430 = vadd.f32 0.0, %v429
        %431 = vmatmul.f32.gmra.mxu0 %v331
        %v432 = vpop.f32.mrf.mxu0
        %v433 = vadd.f32 0.0, %v432
        %434 = vmatmul.f32.gmra.mxu0 %v333
        %v435 = vpop.f32.mrf.mxu0
        %v436 = vadd.f32 0.0, %v435
        %437 = vmatmul.f32.gmra.mxu0 %v335
        %v438 = vpop.f32.mrf.mxu0
        %v439 = vadd.f32 0.0, %v438
        %440 = vmatmul.f32.gmra.mxu0 %v337
        %v441 = vpop.f32.mrf.mxu0
        %v442 = vadd.f32 0.0, %v441
        %443 = vmatmul.f32.gmra.mxu0 %v339
        %v444 = vpop.f32.mrf.mxu0
        %v445 = vadd.f32 0.0, %v444
        %446 = vmatmul.f32.gmra.mxu0 %v341
        %v447 = vpop.f32.mrf.mxu0
        %v448 = vadd.f32 0.0, %v447
        %449 = vmatmul.f32.gmra.mxu0 %v343
        %v450 = vpop.f32.mrf.mxu0
        %v451 = vadd.f32 0.0, %v450
        %452 = vmatmul.f32.gmra.mxu0 %v345
        %v453 = vpop.f32.mrf.mxu0
        %v454 = vadd.f32 0.0, %v453
        %455 = vmatmul.f32.gmra.mxu0 %v347
        %v456 = vpop.f32.mrf.mxu0
        %v457 = vadd.f32 0.0, %v456
        %458 = vmatmul.f32.gmra.mxu0 %v349
        %v459 = vpop.f32.mrf.mxu0
        %v460 = vadd.f32 0.0, %v459
        %461 = vmatmul.f32.gmra.mxu0 %v351
        %v462 = vpop.f32.mrf.mxu0
        %v463 = vadd.f32 0.0, %v462
        %464 = vmatmul.f32.gmra.mxu0 %v353
        %v465 = vpop.f32.mrf.mxu0
        %v466 = vadd.f32 0.0, %v465
        %467 = vdwg.mxu0
        %468 = vmatpush.xpose.msra.mxu0 0.0
        %469 = vmatpush.xpose.msra.mxu0 0.0
        %470 = vmatpush.xpose.msra.mxu0 0.0
        %471 = vmatpush.xpose.msra.mxu0 0.0
        %472 = vmatpush.xpose.msra.mxu0 0.0
        %473 = vmatpush.xpose.msra.mxu0 0.0
        %474 = vmatpush.xpose.msra.mxu0 0.0
        %475 = vmatpush.xpose.msra.mxu0 0.0
        %476 = vmatpush.xpose.msra.mxu0 0.0
        %477 = vmatpush.xpose.msra.mxu0 0.0
        %478 = vmatpush.xpose.msra.mxu0 0.0
        %479 = vmatpush.xpose.msra.mxu0 0.0
        %480 = vmatpush.xpose.msra.mxu0 0.0
        %481 = vmatpush.xpose.msra.mxu0 0.0
        %482 = vmatpush.xpose.msra.mxu0 0.0
        %483 = vmatpush.xpose.msra.mxu0 %v288
        %484 = vmatmul.f32.gmra.mxu0 %v292
        %v485 = vpop.f32.mrf.mxu0
        %v486 = vadd.f32 %v373, %v485
        %487 = vmatmul.f32.gmra.mxu0 %v294
        %v488 = vpop.f32.mrf.mxu0
        %v489 = vadd.f32 %v376, %v488
        %490 = vmatmul.f32.gmra.mxu0 %v296
        %v491 = vpop.f32.mrf.mxu0
        %v492 = vadd.f32 %v379, %v491
        %493 = vmatmul.f32.gmra.mxu0 %v298
        %v494 = vpop.f32.mrf.mxu0
        %v495 = vadd.f32 %v382, %v494
        %496 = vmatmul.f32.gmra.mxu0 %v300
        %v497 = vpop.f32.mrf.mxu0
        %v498 = vadd.f32 %v385, %v497
        %499 = vmatmul.f32.gmra.mxu0 %v302
        %v500 = vpop.f32.mrf.mxu0
        %v501 = vadd.f32 %v388, %v500
        %502 = vmatmul.f32.gmra.mxu0 %v304
        %v503 = vpop.f32.mrf.mxu0
        %v504 = vadd.f32 %v391, %v503
        %505 = vmatmul.f32.gmra.mxu0 %v306
        %v506 = vpop.f32.mrf.mxu0
        %v507 = vadd.f32 %v394, %v506
        %508 = vmatmul.f32.gmra.mxu0 %v308
        %v509 = vpop.f32.mrf.mxu0
        %v510 = vadd.f32 %v397, %v509
        %511 = vmatmul.f32.gmra.mxu0 %v310
        %v512 = vpop.f32.mrf.mxu0
        %v513 = vadd.f32 %v400, %v512
        %514 = vmatmul.f32.gmra.mxu0 %v312
        %v515 = vpop.f32.mrf.mxu0
        %v516 = vadd.f32 %v403, %v515
        %517 = vmatmul.f32.gmra.mxu0 %v314
        %v518 = vpop.f32.mrf.mxu0
        %v519 = vadd.f32 %v406, %v518
        %520 = vmatmul.f32.gmra.mxu0 %v316
        %v521 = vpop.f32.mrf.mxu0
        %v522 = vadd.f32 %v409, %v521
        %523 = vmatmul.f32.gmra.mxu0 %v318
        %v524 = vpop.f32.mrf.mxu0
        %v525 = vadd.f32 %v412, %v524
        %526 = vmatmul.f32.gmra.mxu0 %v320
        %v527 = vpop.f32.mrf.mxu0
        %v528 = vadd.f32 %v415, %v527
        %529 = vmatmul.f32.gmra.mxu0 %v322
        %v530 = vpop.f32.mrf.mxu0
        %v531 = vadd.f32 %v418, %v530
        %532 = vmatmul.f32.gmra.mxu0 %v324
        %v533 = vpop.f32.mrf.mxu0
        %v534 = vadd.f32 %v421, %v533
        %535 = vmatmul.f32.gmra.mxu0 %v326
        %v536 = vpop.f32.mrf.mxu0
        %v537 = vadd.f32 %v424, %v536
        %538 = vmatmul.f32.gmra.mxu0 %v328
        %v539 = vpop.f32.mrf.mxu0
        %v540 = vadd.f32 %v427, %v539
        %541 = vmatmul.f32.gmra.mxu0 %v330
        %v542 = vpop.f32.mrf.mxu0
        %v543 = vadd.f32 %v430, %v542
        %544 = vmatmul.f32.gmra.mxu0 %v332
        %v545 = vpop.f32.mrf.mxu0
        %v546 = vadd.f32 %v433, %v545
        %547 = vmatmul.f32.gmra.mxu0 %v334
        %v548 = vpop.f32.mrf.mxu0
        %v549 = vadd.f32 %v436, %v548
        %550 = vmatmul.f32.gmra.mxu0 %v336
        %v551 = vpop.f32.mrf.mxu0
        %v552 = vadd.f32 %v439, %v551
        %553 = vmatmul.f32.gmra.mxu0 %v338
        %v554 = vpop.f32.mrf.mxu0
        %v555 = vadd.f32 %v442, %v554
        %556 = vmatmul.f32.gmra.mxu0 %v340
        %v557 = vpop.f32.mrf.mxu0
        %v558 = vadd.f32 %v445, %v557
        %559 = vmatmul.f32.gmra.mxu0 %v342
        %v560 = vpop.f32.mrf.mxu0
        %v561 = vadd.f32 %v448, %v560
        %562 = vmatmul.f32.gmra.mxu0 %v344
        %v563 = vpop.f32.mrf.mxu0
        %v564 = vadd.f32 %v451, %v563
        %565 = vmatmul.f32.gmra.mxu0 %v346
        %v566 = vpop.f32.mrf.mxu0
        %v567 = vadd.f32 %v454, %v566
        %568 = vmatmul.f32.gmra.mxu0 %v348
        %v569 = vpop.f32.mrf.mxu0
        %v570 = vadd.f32 %v457, %v569
        %571 = vmatmul.f32.gmra.mxu0 %v350
        %v572 = vpop.f32.mrf.mxu0
        %v573 = vadd.f32 %v460, %v572
        %574 = vmatmul.f32.gmra.mxu0 %v352
        %v575 = vpop.f32.mrf.mxu0
        %v576 = vadd.f32 %v463, %v575
        %577 = vmatmul.f32.gmra.mxu0 %v354
        %v578 = vpop.f32.mrf.mxu0
        %v579 = vadd.f32 %v466, %v578
        %580 = vdwg.mxu0
        %vm581 = vcmask 64512
        %v583 = vsel %vm581, %v486, 0
        %v586 = vsel %vm581, %v489, 0
        %v589 = vsel %vm581, %v492, 0
        %v592 = vsel %vm581, %v495, 0
        %v595 = vsel %vm581, %v498, 0
        %v598 = vsel %vm581, %v501, 0
        %v601 = vsel %vm581, %v504, 0
        %v604 = vsel %vm581, %v507, 0
        %v607 = vsel %vm581, %v510, 0
        %v610 = vsel %vm581, %v513, 0
        %v613 = vsel %vm581, %v516, 0
        %v616 = vsel %vm581, %v519, 0
        %v619 = vsel %vm581, %v522, 0
        %v622 = vsel %vm581, %v525, 0
        %v625 = vsel %vm581, %v528, 0
        %v628 = vsel %vm581, %v531, 0
        %v631 = vsel %vm581, %v534, 0
        %v634 = vsel %vm581, %v537, 0
        %v637 = vsel %vm581, %v540, 0
        %v640 = vsel %vm581, %v543, 0
        %v643 = vsel %vm581, %v546, 0
        %v646 = vsel %vm581, %v549, 0
        %v649 = vsel %vm581, %v552, 0
        %v652 = vsel %vm581, %v555, 0
        %v655 = vsel %vm581, %v558, 0
        %v658 = vsel %vm581, %v561, 0
        %v661 = vsel %vm581, %v564, 0
        %v664 = vsel %vm581, %v567, 0
        %v667 = vsel %vm581, %v570, 0
        %v670 = vsel %vm581, %v573, 0
        %v673 = vsel %vm581, %v576, 0
        %v676 = vsel %vm581, %v579, 0
        %678 = vmatpush.msra.mxu0 0.0
        %679 = vmatpush.msra.mxu0 0.0
        %680 = vmatpush.msra.mxu0 0.0
        %681 = vmatpush.msra.mxu0 0.0
        %682 = vmatpush.msra.mxu0 0.0
        %683 = vmatpush.msra.mxu0 0.0
        %684 = vmatpush.msra.mxu0 0.0
        %685 = vmatpush.msra.mxu0 0.0
        %686 = vmatpush.msra.mxu0 0.0
        %687 = vmatpush.msra.mxu0 0.0
        %688 = vmatpush.msra.mxu0 0.0
        %689 = vmatpush.msra.mxu0 0.0
        %690 = vmatpush.msra.mxu0 0.0
        %691 = vmatpush.msra.mxu0 0.0
        %692 = vmatpush.msra.mxu0 0.0
        %693 = vmatpush.msra.mxu0 %v289
        %694 = vmatmul.f32.gmra.mxu0 %v583
        %v695 = vpop.f32.mrf.mxu0
        %v696 = vadd.f32 0.0, %v695
        %697 = vmatmul.f32.gmra.mxu0 %v586
        %v698 = vpop.f32.mrf.mxu0
        %v699 = vadd.f32 0.0, %v698
        %700 = vmatmul.f32.gmra.mxu0 %v589
        %v701 = vpop.f32.mrf.mxu0
        %v702 = vadd.f32 0.0, %v701
        %703 = vmatmul.f32.gmra.mxu0 %v592
        %v704 = vpop.f32.mrf.mxu0
        %v705 = vadd.f32 0.0, %v704
        %706 = vmatmul.f32.gmra.mxu0 %v595
        %v707 = vpop.f32.mrf.mxu0
        %v708 = vadd.f32 0.0, %v707
        %709 = vmatmul.f32.gmra.mxu0 %v598
        %v710 = vpop.f32.mrf.mxu0
        %v711 = vadd.f32 0.0, %v710
        %712 = vmatmul.f32.gmra.mxu0 %v601
        %v713 = vpop.f32.mrf.mxu0
        %v714 = vadd.f32 0.0, %v713
        %715 = vmatmul.f32.gmra.mxu0 %v604
        %v716 = vpop.f32.mrf.mxu0
        %v717 = vadd.f32 0.0, %v716
        %718 = vmatmul.f32.gmra.mxu0 %v607
        %v719 = vpop.f32.mrf.mxu0
        %v720 = vadd.f32 0.0, %v719
        %721 = vmatmul.f32.gmra.mxu0 %v610
        %v722 = vpop.f32.mrf.mxu0
        %v723 = vadd.f32 0.0, %v722
        %724 = vmatmul.f32.gmra.mxu0 %v613
        %v725 = vpop.f32.mrf.mxu0
        %v726 = vadd.f32 0.0, %v725
        %727 = vmatmul.f32.gmra.mxu0 %v616
        %v728 = vpop.f32.mrf.mxu0
        %v729 = vadd.f32 0.0, %v728
        %730 = vmatmul.f32.gmra.mxu0 %v619
        %v731 = vpop.f32.mrf.mxu0
        %v732 = vadd.f32 0.0, %v731
        %733 = vmatmul.f32.gmra.mxu0 %v622
        %v734 = vpop.f32.mrf.mxu0
        %v735 = vadd.f32 0.0, %v734
        %736 = vmatmul.f32.gmra.mxu0 %v625
        %v737 = vpop.f32.mrf.mxu0
        %v738 = vadd.f32 0.0, %v737
        %739 = vmatmul.f32.gmra.mxu0 %v628
        %v740 = vpop.f32.mrf.mxu0
        %v741 = vadd.f32 0.0, %v740
        %742 = vmatmul.f32.gmra.mxu0 %v631
        %v743 = vpop.f32.mrf.mxu0
        %v744 = vadd.f32 0.0, %v743
        %745 = vmatmul.f32.gmra.mxu0 %v634
        %v746 = vpop.f32.mrf.mxu0
        %v747 = vadd.f32 0.0, %v746
        %748 = vmatmul.f32.gmra.mxu0 %v637
        %v749 = vpop.f32.mrf.mxu0
        %v750 = vadd.f32 0.0, %v749
        %751 = vmatmul.f32.gmra.mxu0 %v640
        %v752 = vpop.f32.mrf.mxu0
        %v753 = vadd.f32 0.0, %v752
        %754 = vmatmul.f32.gmra.mxu0 %v643
        %v755 = vpop.f32.mrf.mxu0
        %v756 = vadd.f32 0.0, %v755
        %757 = vmatmul.f32.gmra.mxu0 %v646
        %v758 = vpop.f32.mrf.mxu0
        %v759 = vadd.f32 0.0, %v758
        %760 = vmatmul.f32.gmra.mxu0 %v649
        %v761 = vpop.f32.mrf.mxu0
        %v762 = vadd.f32 0.0, %v761
        %763 = vmatmul.f32.gmra.mxu0 %v652
        %v764 = vpop.f32.mrf.mxu0
        %v765 = vadd.f32 0.0, %v764
        %766 = vmatmul.f32.gmra.mxu0 %v655
        %v767 = vpop.f32.mrf.mxu0
        %v768 = vadd.f32 0.0, %v767
        %769 = vmatmul.f32.gmra.mxu0 %v658
        %v770 = vpop.f32.mrf.mxu0
        %v771 = vadd.f32 0.0, %v770
        %772 = vmatmul.f32.gmra.mxu0 %v661
        %v773 = vpop.f32.mrf.mxu0
        %v774 = vadd.f32 0.0, %v773
        %775 = vmatmul.f32.gmra.mxu0 %v664
        %v776 = vpop.f32.mrf.mxu0
        %v777 = vadd.f32 0.0, %v776
        %778 = vmatmul.f32.gmra.mxu0 %v667
        %v779 = vpop.f32.mrf.mxu0
        %v780 = vadd.f32 0.0, %v779
        %781 = vmatmul.f32.gmra.mxu0 %v670
        %v782 = vpop.f32.mrf.mxu0
        %v783 = vadd.f32 0.0, %v782
        %784 = vmatmul.f32.gmra.mxu0 %v673
        %v785 = vpop.f32.mrf.mxu0
        %v786 = vadd.f32 0.0, %v785
        %787 = vmatmul.f32.gmra.mxu0 %v676
        %v788 = vpop.f32.mrf.mxu0
        %v789 = vadd.f32 0.0, %v788
        %790 = vdwg.mxu0
        %791 = vmatpush.msra.mxu0 0.0
        %792 = vmatpush.msra.mxu0 0.0
        %793 = vmatpush.msra.mxu0 0.0
        %794 = vmatpush.msra.mxu0 0.0
        %795 = vmatpush.msra.mxu0 0.0
        %796 = vmatpush.msra.mxu0 0.0
        %797 = vmatpush.msra.mxu0 0.0
        %798 = vmatpush.msra.mxu0 0.0
        %799 = vmatpush.msra.mxu0 0.0
        %800 = vmatpush.msra.mxu0 0.0
        %801 = vmatpush.msra.mxu0 0.0
        %802 = vmatpush.msra.mxu0 0.0
        %803 = vmatpush.msra.mxu0 0.0
        %804 = vmatpush.msra.mxu0 0.0
        %805 = vmatpush.msra.mxu0 0.0
        %806 = vmatpush.msra.mxu0 %v290
        %807 = vmatmul.f32.gmra.mxu0 %v583
        %v808 = vpop.f32.mrf.mxu0
        %v809 = vadd.f32 0.0, %v808
        %810 = vmatmul.f32.gmra.mxu0 %v586
        %v811 = vpop.f32.mrf.mxu0
        %v812 = vadd.f32 0.0, %v811
        %813 = vmatmul.f32.gmra.mxu0 %v589
        %v814 = vpop.f32.mrf.mxu0
        %v815 = vadd.f32 0.0, %v814
        %816 = vmatmul.f32.gmra.mxu0 %v592
        %v817 = vpop.f32.mrf.mxu0
        %v818 = vadd.f32 0.0, %v817
        %819 = vmatmul.f32.gmra.mxu0 %v595
        %v820 = vpop.f32.mrf.mxu0
        %v821 = vadd.f32 0.0, %v820
        %822 = vmatmul.f32.gmra.mxu0 %v598
        %v823 = vpop.f32.mrf.mxu0
        %v824 = vadd.f32 0.0, %v823
        %825 = vmatmul.f32.gmra.mxu0 %v601
        %v826 = vpop.f32.mrf.mxu0
        %v827 = vadd.f32 0.0, %v826
        %828 = vmatmul.f32.gmra.mxu0 %v604
        %v829 = vpop.f32.mrf.mxu0
        %v830 = vadd.f32 0.0, %v829
        %831 = vmatmul.f32.gmra.mxu0 %v607
        %v832 = vpop.f32.mrf.mxu0
        %v833 = vadd.f32 0.0, %v832
        %834 = vmatmul.f32.gmra.mxu0 %v610
        %v835 = vpop.f32.mrf.mxu0
        %v836 = vadd.f32 0.0, %v835
        %837 = vmatmul.f32.gmra.mxu0 %v613
        %v838 = vpop.f32.mrf.mxu0
        %v839 = vadd.f32 0.0, %v838
        %840 = vmatmul.f32.gmra.mxu0 %v616
        %v841 = vpop.f32.mrf.mxu0
        %v842 = vadd.f32 0.0, %v841
        %843 = vmatmul.f32.gmra.mxu0 %v619
        %v844 = vpop.f32.mrf.mxu0
        %v845 = vadd.f32 0.0, %v844
        %846 = vmatmul.f32.gmra.mxu0 %v622
        %v847 = vpop.f32.mrf.mxu0
        %v848 = vadd.f32 0.0, %v847
        %849 = vmatmul.f32.gmra.mxu0 %v625
        %v850 = vpop.f32.mrf.mxu0
        %v851 = vadd.f32 0.0, %v850
        %852 = vmatmul.f32.gmra.mxu0 %v628
        %v853 = vpop.f32.mrf.mxu0
        %v854 = vadd.f32 0.0, %v853
        %855 = vmatmul.f32.gmra.mxu0 %v631
        %v856 = vpop.f32.mrf.mxu0
        %v857 = vadd.f32 0.0, %v856
        %858 = vmatmul.f32.gmra.mxu0 %v634
        %v859 = vpop.f32.mrf.mxu0
        %v860 = vadd.f32 0.0, %v859
        %861 = vmatmul.f32.gmra.mxu0 %v637
        %v862 = vpop.f32.mrf.mxu0
        %v863 = vadd.f32 0.0, %v862
        %864 = vmatmul.f32.gmra.mxu0 %v640
        %v865 = vpop.f32.mrf.mxu0
        %v866 = vadd.f32 0.0, %v865
        %867 = vmatmul.f32.gmra.mxu0 %v643
        %v868 = vpop.f32.mrf.mxu0
        %v869 = vadd.f32 0.0, %v868
        %870 = vmatmul.f32.gmra.mxu0 %v646
        %v871 = vpop.f32.mrf.mxu0
        %v872 = vadd.f32 0.0, %v871
        %873 = vmatmul.f32.gmra.mxu0 %v649
        %v874 = vpop.f32.mrf.mxu0
        %v875 = vadd.f32 0.0, %v874
        %876 = vmatmul.f32.gmra.mxu0 %v652
        %v877 = vpop.f32.mrf.mxu0
        %v878 = vadd.f32 0.0, %v877
        %879 = vmatmul.f32.gmra.mxu0 %v655
        %v880 = vpop.f32.mrf.mxu0
        %v881 = vadd.f32 0.0, %v880
        %882 = vmatmul.f32.gmra.mxu0 %v658
        %v883 = vpop.f32.mrf.mxu0
        %v884 = vadd.f32 0.0, %v883
        %885 = vmatmul.f32.gmra.mxu0 %v661
        %v886 = vpop.f32.mrf.mxu0
        %v887 = vadd.f32 0.0, %v886
        %888 = vmatmul.f32.gmra.mxu0 %v664
        %v889 = vpop.f32.mrf.mxu0
        %v890 = vadd.f32 0.0, %v889
        %891 = vmatmul.f32.gmra.mxu0 %v667
        %v892 = vpop.f32.mrf.mxu0
        %v893 = vadd.f32 0.0, %v892
        %894 = vmatmul.f32.gmra.mxu0 %v670
        %v895 = vpop.f32.mrf.mxu0
        %v896 = vadd.f32 0.0, %v895
        %897 = vmatmul.f32.gmra.mxu0 %v673
        %v898 = vpop.f32.mrf.mxu0
        %v899 = vadd.f32 0.0, %v898
        %900 = vmatmul.f32.gmra.mxu0 %v676
        %v901 = vpop.f32.mrf.mxu0
        %v902 = vadd.f32 0.0, %v901
        %903 = vdwg.mxu0
        %v904 = vmax.f32 %v696, %v809
        %905 = vmax.xlane.f32.xlu0 %v904
        %v906 = vpop.xlane.xlu0 %905
        %v907 = vmax.f32 %v699, %v812
        %908 = vmax.xlane.f32.xlu0 %v907
        %v909 = vpop.xlane.xlu0 %908
        %v910 = vmax.f32 %v702, %v815
        %911 = vmax.xlane.f32.xlu0 %v910
        %v912 = vpop.xlane.xlu0 %911
        %v913 = vmax.f32 %v705, %v818
        %914 = vmax.xlane.f32.xlu0 %v913
        %v915 = vpop.xlane.xlu0 %914
        %v916 = vmax.f32 %v708, %v821
        %917 = vmax.xlane.f32.xlu0 %v916
        %v918 = vpop.xlane.xlu0 %917
        %v919 = vmax.f32 %v711, %v824
        %920 = vmax.xlane.f32.xlu0 %v919
        %v921 = vpop.xlane.xlu0 %920
        %v922 = vmax.f32 %v714, %v827
        %923 = vmax.xlane.f32.xlu0 %v922
        %v924 = vpop.xlane.xlu0 %923
        %v925 = vmax.f32 %v717, %v830
        %926 = vmax.xlane.f32.xlu0 %v925
        %v927 = vpop.xlane.xlu0 %926
        %v928 = vmax.f32 %v720, %v833
        %929 = vmax.xlane.f32.xlu0 %v928
        %v930 = vpop.xlane.xlu0 %929
        %v931 = vmax.f32 %v723, %v836
        %932 = vmax.xlane.f32.xlu0 %v931
        %v933 = vpop.xlane.xlu0 %932
        %v934 = vmax.f32 %v726, %v839
        %935 = vmax.xlane.f32.xlu0 %v934
        %v936 = vpop.xlane.xlu0 %935
        %v937 = vmax.f32 %v729, %v842
        %938 = vmax.xlane.f32.xlu0 %v937
        %v939 = vpop.xlane.xlu0 %938
        %v940 = vmax.f32 %v732, %v845
        %941 = vmax.xlane.f32.xlu0 %v940
        %v942 = vpop.xlane.xlu0 %941
        %v943 = vmax.f32 %v735, %v848
        %944 = vmax.xlane.f32.xlu0 %v943
        %v945 = vpop.xlane.xlu0 %944
        %v946 = vmax.f32 %v738, %v851
        %947 = vmax.xlane.f32.xlu0 %v946
        %v948 = vpop.xlane.xlu0 %947
        %v949 = vmax.f32 %v741, %v854
        %950 = vmax.xlane.f32.xlu0 %v949
        %v951 = vpop.xlane.xlu0 %950
        %v952 = vmax.f32 %v744, %v857
        %953 = vmax.xlane.f32.xlu0 %v952
        %v954 = vpop.xlane.xlu0 %953
        %v955 = vmax.f32 %v747, %v860
        %956 = vmax.xlane.f32.xlu0 %v955
        %v957 = vpop.xlane.xlu0 %956
        %v958 = vmax.f32 %v750, %v863
        %959 = vmax.xlane.f32.xlu0 %v958
        %v960 = vpop.xlane.xlu0 %959
        %v961 = vmax.f32 %v753, %v866
        %962 = vmax.xlane.f32.xlu0 %v961
        %v963 = vpop.xlane.xlu0 %962
        %v964 = vmax.f32 %v756, %v869
        %965 = vmax.xlane.f32.xlu0 %v964
        %v966 = vpop.xlane.xlu0 %965
        %v967 = vmax.f32 %v759, %v872
        %968 = vmax.xlane.f32.xlu0 %v967
        %v969 = vpop.xlane.xlu0 %968
        %v970 = vmax.f32 %v762, %v875
        %971 = vmax.xlane.f32.xlu0 %v970
        %v972 = vpop.xlane.xlu0 %971
        %v973 = vmax.f32 %v765, %v878
        %974 = vmax.xlane.f32.xlu0 %v973
        %v975 = vpop.xlane.xlu0 %974
        %v976 = vmax.f32 %v768, %v881
        %977 = vmax.xlane.f32.xlu0 %v976
        %v978 = vpop.xlane.xlu0 %977
        %v979 = vmax.f32 %v771, %v884
        %980 = vmax.xlane.f32.xlu0 %v979
        %v981 = vpop.xlane.xlu0 %980
        %v982 = vmax.f32 %v774, %v887
        %983 = vmax.xlane.f32.xlu0 %v982
        %v984 = vpop.xlane.xlu0 %983
        %v985 = vmax.f32 %v777, %v890
        %986 = vmax.xlane.f32.xlu0 %v985
        %v987 = vpop.xlane.xlu0 %986
        %v988 = vmax.f32 %v780, %v893
        %989 = vmax.xlane.f32.xlu0 %v988
        %v990 = vpop.xlane.xlu0 %989
        %v991 = vmax.f32 %v783, %v896
        %992 = vmax.xlane.f32.xlu0 %v991
        %v993 = vpop.xlane.xlu0 %992
        %v994 = vmax.f32 %v786, %v899
        %995 = vmax.xlane.f32.xlu0 %v994
        %v996 = vpop.xlane.xlu0 %995
        %v997 = vmax.f32 %v789, %v902
        %998 = vmax.xlane.f32.xlu0 %v997
        %v999 = vpop.xlane.xlu0 %998
        %v1000 = vsub.f32 %v696, %v906
        %v1001 = vsub.f32 %v809, %v906
        %v1002 = vsub.f32 %v699, %v909
        %v1003 = vsub.f32 %v812, %v909
        %v1004 = vsub.f32 %v702, %v912
        %v1005 = vsub.f32 %v815, %v912
        %v1006 = vsub.f32 %v705, %v915
        %v1007 = vsub.f32 %v818, %v915
        %v1008 = vsub.f32 %v708, %v918
        %v1009 = vsub.f32 %v821, %v918
        %v1010 = vsub.f32 %v711, %v921
        %v1011 = vsub.f32 %v824, %v921
        %v1012 = vsub.f32 %v714, %v924
        %v1013 = vsub.f32 %v827, %v924
        %v1014 = vsub.f32 %v717, %v927
        %v1015 = vsub.f32 %v830, %v927
        %v1016 = vsub.f32 %v720, %v930
        %v1017 = vsub.f32 %v833, %v930
        %v1018 = vsub.f32 %v723, %v933
        %v1019 = vsub.f32 %v836, %v933
        %v1020 = vsub.f32 %v726, %v936
        %v1021 = vsub.f32 %v839, %v936
        %v1022 = vsub.f32 %v729, %v939
        %v1023 = vsub.f32 %v842, %v939
        %v1024 = vsub.f32 %v732, %v942
        %v1025 = vsub.f32 %v845, %v942
        %v1026 = vsub.f32 %v735, %v945
        %v1027 = vsub.f32 %v848, %v945
        %v1028 = vsub.f32 %v738, %v948
        %v1029 = vsub.f32 %v851, %v948
        %v1030 = vsub.f32 %v741, %v951
        %v1031 = vsub.f32 %v854, %v951
        %v1032 = vsub.f32 %v744, %v954
        %v1033 = vsub.f32 %v857, %v954
        %v1034 = vsub.f32 %v747, %v957
        %v1035 = vsub.f32 %v860, %v957
        %v1036 = vsub.f32 %v750, %v960
        %v1037 = vsub.f32 %v863, %v960
        %v1038 = vsub.f32 %v753, %v963
        %v1039 = vsub.f32 %v866, %v963
        %v1040 = vsub.f32 %v756, %v966
        %v1041 = vsub.f32 %v869, %v966
        %v1042 = vsub.f32 %v759, %v969
        %v1043 = vsub.f32 %v872, %v969
        %v1044 = vsub.f32 %v762, %v972
        %v1045 = vsub.f32 %v875, %v972
        %v1046 = vsub.f32 %v765, %v975
        %v1047 = vsub.f32 %v878, %v975
        %v1048 = vsub.f32 %v768, %v978
        %v1049 = vsub.f32 %v881, %v978
        %v1050 = vsub.f32 %v771, %v981
        %v1051 = vsub.f32 %v884, %v981
        %v1052 = vsub.f32 %v774, %v984
        %v1053 = vsub.f32 %v887, %v984
        %v1054 = vsub.f32 %v777, %v987
        %v1055 = vsub.f32 %v890, %v987
        %v1056 = vsub.f32 %v780, %v990
        %v1057 = vsub.f32 %v893, %v990
        %v1058 = vsub.f32 %v783, %v993
        %v1059 = vsub.f32 %v896, %v993
        %v1060 = vsub.f32 %v786, %v996
        %v1061 = vsub.f32 %v899, %v996
        %v1062 = vsub.f32 %v789, %v999
        %v1063 = vsub.f32 %v902, %v999
        %v1064 = vmul.f32 %v1000, 1.442695
        %v1065 = vpow.pop %v1064
        %v1066 = vmul.f32 %v1001, 1.442695
        %v1067 = vpow.pop %v1066
        %v1068 = vmul.f32 %v1002, 1.442695
        %v1069 = vpow.pop %v1068
        %v1070 = vmul.f32 %v1003, 1.442695
        %v1071 = vpow.pop %v1070
        %v1072 = vmul.f32 %v1004, 1.442695
        %v1073 = vpow.pop %v1072
        %v1074 = vmul.f32 %v1005, 1.442695
        %v1075 = vpow.pop %v1074
        %v1076 = vmul.f32 %v1006, 1.442695
        %v1077 = vpow.pop %v1076
        %v1078 = vmul.f32 %v1007, 1.442695
        %v1079 = vpow.pop %v1078
        %v1080 = vmul.f32 %v1008, 1.442695
        %v1081 = vpow.pop %v1080
        %v1082 = vmul.f32 %v1009, 1.442695
        %v1083 = vpow.pop %v1082
        %v1084 = vmul.f32 %v1010, 1.442695
        %v1085 = vpow.pop %v1084
        %v1086 = vmul.f32 %v1011, 1.442695
        %v1087 = vpow.pop %v1086
        %v1088 = vmul.f32 %v1012, 1.442695
        %v1089 = vpow.pop %v1088
        %v1090 = vmul.f32 %v1013, 1.442695
        %v1091 = vpow.pop %v1090
        %v1092 = vmul.f32 %v1014, 1.442695
        %v1093 = vpow.pop %v1092
        %v1094 = vmul.f32 %v1015, 1.442695
        %v1095 = vpow.pop %v1094
        %v1096 = vmul.f32 %v1016, 1.442695
        %v1097 = vpow.pop %v1096
        %v1098 = vmul.f32 %v1017, 1.442695
        %v1099 = vpow.pop %v1098
        %v1100 = vmul.f32 %v1018, 1.442695
        %v1101 = vpow.pop %v1100
        %v1102 = vmul.f32 %v1019, 1.442695
        %v1103 = vpow.pop %v1102
        %v1104 = vmul.f32 %v1020, 1.442695
        %v1105 = vpow.pop %v1104
        %v1106 = vmul.f32 %v1021, 1.442695
        %v1107 = vpow.pop %v1106
        %v1108 = vmul.f32 %v1022, 1.442695
        %v1109 = vpow.pop %v1108
        %v1110 = vmul.f32 %v1023, 1.442695
        %v1111 = vpow.pop %v1110
        %v1112 = vmul.f32 %v1024, 1.442695
        %v1113 = vpow.pop %v1112
        %v1114 = vmul.f32 %v1025, 1.442695
        %v1115 = vpow.pop %v1114
        %v1116 = vmul.f32 %v1026, 1.442695
        %v1117 = vpow.pop %v1116
        %v1118 = vmul.f32 %v1027, 1.442695
        %v1119 = vpow.pop %v1118
        %v1120 = vmul.f32 %v1028, 1.442695
        %v1121 = vpow.pop %v1120
        %v1122 = vmul.f32 %v1029, 1.442695
        %v1123 = vpow.pop %v1122
        %v1124 = vmul.f32 %v1030, 1.442695
        %v1125 = vpow.pop %v1124
        %v1126 = vmul.f32 %v1031, 1.442695
        %v1127 = vpow.pop %v1126
        %v1128 = vmul.f32 %v1032, 1.442695
        %v1129 = vpow.pop %v1128
        %v1130 = vmul.f32 %v1033, 1.442695
        %v1131 = vpow.pop %v1130
        %v1132 = vmul.f32 %v1034, 1.442695
        %v1133 = vpow.pop %v1132
        %v1134 = vmul.f32 %v1035, 1.442695
        %v1135 = vpow.pop %v1134
        %v1136 = vmul.f32 %v1036, 1.442695
        %v1137 = vpow.pop %v1136
        %v1138 = vmul.f32 %v1037, 1.442695
        %v1139 = vpow.pop %v1138
        %v1140 = vmul.f32 %v1038, 1.442695
        %v1141 = vpow.pop %v1140
        %v1142 = vmul.f32 %v1039, 1.442695
        %v1143 = vpow.pop %v1142
        %v1144 = vmul.f32 %v1040, 1.442695
        %v1145 = vpow.pop %v1144
        %v1146 = vmul.f32 %v1041, 1.442695
        %v1147 = vpow.pop %v1146
        %v1148 = vmul.f32 %v1042, 1.442695
        %v1149 = vpow.pop %v1148
        %v1150 = vmul.f32 %v1043, 1.442695
        %v1151 = vpow.pop %v1150
        %v1152 = vmul.f32 %v1044, 1.442695
        %v1153 = vpow.pop %v1152
        %v1154 = vmul.f32 %v1045, 1.442695
        %v1155 = vpow.pop %v1154
        %v1156 = vmul.f32 %v1046, 1.442695
        %v1157 = vpow.pop %v1156
        %v1158 = vmul.f32 %v1047, 1.442695
        %v1159 = vpow.pop %v1158
        %v1160 = vmul.f32 %v1048, 1.442695
        %v1161 = vpow.pop %v1160
        %v1162 = vmul.f32 %v1049, 1.442695
        %v1163 = vpow.pop %v1162
        %v1164 = vmul.f32 %v1050, 1.442695
        %v1165 = vpow.pop %v1164
        %v1166 = vmul.f32 %v1051, 1.442695
        %v1167 = vpow.pop %v1166
        %v1168 = vmul.f32 %v1052, 1.442695
        %v1169 = vpow.pop %v1168
        %v1170 = vmul.f32 %v1053, 1.442695
        %v1171 = vpow.pop %v1170
        %v1172 = vmul.f32 %v1054, 1.442695
        %v1173 = vpow.pop %v1172
        %v1174 = vmul.f32 %v1055, 1.442695
        %v1175 = vpow.pop %v1174
        %v1176 = vmul.f32 %v1056, 1.442695
        %v1177 = vpow.pop %v1176
        %v1178 = vmul.f32 %v1057, 1.442695
        %v1179 = vpow.pop %v1178
        %v1180 = vmul.f32 %v1058, 1.442695
        %v1181 = vpow.pop %v1180
        %v1182 = vmul.f32 %v1059, 1.442695
        %v1183 = vpow.pop %v1182
        %v1184 = vmul.f32 %v1060, 1.442695
        %v1185 = vpow.pop %v1184
        %v1186 = vmul.f32 %v1061, 1.442695
        %v1187 = vpow.pop %v1186
        %v1188 = vmul.f32 %v1062, 1.442695
        %v1189 = vpow.pop %v1188
        %v1190 = vmul.f32 %v1063, 1.442695
        %v1191 = vpow.pop %v1190
        %v1192 = vadd.f32 %v1065, %v1067
        %1193 = vadd.xlane.f32.xlu0 %v1192
        %v1194 = vpop.xlane.xlu0 %1193
        %v1195 = vadd.f32 %v1069, %v1071
        %1196 = vadd.xlane.f32.xlu0 %v1195
        %v1197 = vpop.xlane.xlu0 %1196
        %v1198 = vadd.f32 %v1073, %v1075
        %1199 = vadd.xlane.f32.xlu0 %v1198
        %v1200 = vpop.xlane.xlu0 %1199
        %v1201 = vadd.f32 %v1077, %v1079
        %1202 = vadd.xlane.f32.xlu0 %v1201
        %v1203 = vpop.xlane.xlu0 %1202
        %v1204 = vadd.f32 %v1081, %v1083
        %1205 = vadd.xlane.f32.xlu0 %v1204
        %v1206 = vpop.xlane.xlu0 %1205
        %v1207 = vadd.f32 %v1085, %v1087
        %1208 = vadd.xlane.f32.xlu0 %v1207
        %v1209 = vpop.xlane.xlu0 %1208
        %v1210 = vadd.f32 %v1089, %v1091
        %1211 = vadd.xlane.f32.xlu0 %v1210
        %v1212 = vpop.xlane.xlu0 %1211
        %v1213 = vadd.f32 %v1093, %v1095
        %1214 = vadd.xlane.f32.xlu0 %v1213
        %v1215 = vpop.xlane.xlu0 %1214
        %v1216 = vadd.f32 %v1097, %v1099
        %1217 = vadd.xlane.f32.xlu0 %v1216
        %v1218 = vpop.xlane.xlu0 %1217
        %v1219 = vadd.f32 %v1101, %v1103
        %1220 = vadd.xlane.f32.xlu0 %v1219
        %v1221 = vpop.xlane.xlu0 %1220
        %v1222 = vadd.f32 %v1105, %v1107
        %1223 = vadd.xlane.f32.xlu0 %v1222
        %v1224 = vpop.xlane.xlu0 %1223
        %v1225 = vadd.f32 %v1109, %v1111
        %1226 = vadd.xlane.f32.xlu0 %v1225
        %v1227 = vpop.xlane.xlu0 %1226
        %v1228 = vadd.f32 %v1113, %v1115
        %1229 = vadd.xlane.f32.xlu0 %v1228
        %v1230 = vpop.xlane.xlu0 %1229
        %v1231 = vadd.f32 %v1117, %v1119
        %1232 = vadd.xlane.f32.xlu0 %v1231
        %v1233 = vpop.xlane.xlu0 %1232
        %v1234 = vadd.f32 %v1121, %v1123
        %1235 = vadd.xlane.f32.xlu0 %v1234
        %v1236 = vpop.xlane.xlu0 %1235
        %v1237 = vadd.f32 %v1125, %v1127
        %1238 = vadd.xlane.f32.xlu0 %v1237
        %v1239 = vpop.xlane.xlu0 %1238
        %v1240 = vadd.f32 %v1129, %v1131
        %1241 = vadd.xlane.f32.xlu0 %v1240
        %v1242 = vpop.xlane.xlu0 %1241
        %v1243 = vadd.f32 %v1133, %v1135
        %1244 = vadd.xlane.f32.xlu0 %v1243
        %v1245 = vpop.xlane.xlu0 %1244
        %v1246 = vadd.f32 %v1137, %v1139
        %1247 = vadd.xlane.f32.xlu0 %v1246
        %v1248 = vpop.xlane.xlu0 %1247
        %v1249 = vadd.f32 %v1141, %v1143
        %1250 = vadd.xlane.f32.xlu0 %v1249
        %v1251 = vpop.xlane.xlu0 %1250
        %v1252 = vadd.f32 %v1145, %v1147
        %1253 = vadd.xlane.f32.xlu0 %v1252
        %v1254 = vpop.xlane.xlu0 %1253
        %v1255 = vadd.f32 %v1149, %v1151
        %1256 = vadd.xlane.f32.xlu0 %v1255
        %v1257 = vpop.xlane.xlu0 %1256
        %v1258 = vadd.f32 %v1153, %v1155
        %1259 = vadd.xlane.f32.xlu0 %v1258
        %v1260 = vpop.xlane.xlu0 %1259
        %v1261 = vadd.f32 %v1157, %v1159
        %1262 = vadd.xlane.f32.xlu0 %v1261
        %v1263 = vpop.xlane.xlu0 %1262
        %v1264 = vadd.f32 %v1161, %v1163
        %1265 = vadd.xlane.f32.xlu0 %v1264
        %v1266 = vpop.xlane.xlu0 %1265
        %v1267 = vadd.f32 %v1165, %v1167
        %1268 = vadd.xlane.f32.xlu0 %v1267
        %v1269 = vpop.xlane.xlu0 %1268
        %v1270 = vadd.f32 %v1169, %v1171
        %1271 = vadd.xlane.f32.xlu0 %v1270
        %v1272 = vpop.xlane.xlu0 %1271
        %v1273 = vadd.f32 %v1173, %v1175
        %1274 = vadd.xlane.f32.xlu0 %v1273
        %v1275 = vpop.xlane.xlu0 %1274
        %v1276 = vadd.f32 %v1177, %v1179
        %1277 = vadd.xlane.f32.xlu0 %v1276
        %v1278 = vpop.xlane.xlu0 %1277
        %v1279 = vadd.f32 %v1181, %v1183
        %1280 = vadd.xlane.f32.xlu0 %v1279
        %v1281 = vpop.xlane.xlu0 %1280
        %v1282 = vadd.f32 %v1185, %v1187
        %1283 = vadd.xlane.f32.xlu0 %v1282
        %v1284 = vpop.xlane.xlu0 %1283
        %v1285 = vadd.f32 %v1189, %v1191
        %1286 = vadd.xlane.f32.xlu0 %v1285
        %v1287 = vpop.xlane.xlu0 %1286
        %v1288 = vrcp.pop %v1194
        %v1289 = vmul.f32 %v1194, %v1288
        %v1290 = vsub.f32 1.0, %v1289
        %v1291 = vmul.f32 %v1288, %v1290
        %v1292 = vadd.f32 %v1288, %v1291
        %vm1293 = vweird.f32 %v1194
        %vm1294 = vweird.f32 %v1288
        %vm1295 = vmor %vm1293, %vm1294
        %v1296 = vsel %vm1295, %v1288, %v1292
        %v1297 = vand.u32 2147483647, %v1194
        %vm1298 = vcmp.eq.f32.partialorder %v1297, 8.507059e+37
        %v1299 = vand.u32 %v1194, 2147483648
        %v1300 = vor.u32 1.1754944e-38, %v1299
        %v1301 = vsel %vm1298, %v1300, %v1296
        %v1302 = vrcp.pop %v1197
        %v1303 = vmul.f32 %v1197, %v1302
        %v1304 = vsub.f32 1.0, %v1303
        %v1305 = vmul.f32 %v1302, %v1304
        %v1306 = vadd.f32 %v1302, %v1305
        %vm1307 = vweird.f32 %v1197
        %vm1308 = vweird.f32 %v1302
        %vm1309 = vmor %vm1307, %vm1308
        %v1310 = vsel %vm1309, %v1302, %v1306
        %v1311 = vand.u32 2147483647, %v1197
        %vm1312 = vcmp.eq.f32.partialorder %v1311, 8.507059e+37
        %v1313 = vand.u32 %v1197, 2147483648
        %v1314 = vor.u32 1.1754944e-38, %v1313
        %v1315 = vsel %vm1312, %v1314, %v1310
        %v1316 = vrcp.pop %v1200
        %v1317 = vmul.f32 %v1200, %v1316
        %v1318 = vsub.f32 1.0, %v1317
        %v1319 = vmul.f32 %v1316, %v1318
        %v1320 = vadd.f32 %v1316, %v1319
        %vm1321 = vweird.f32 %v1200
        %vm1322 = vweird.f32 %v1316
        %vm1323 = vmor %vm1321, %vm1322
        %v1324 = vsel %vm1323, %v1316, %v1320
        %v1325 = vand.u32 2147483647, %v1200
        %vm1326 = vcmp.eq.f32.partialorder %v1325, 8.507059e+37
        %v1327 = vand.u32 %v1200, 2147483648
        %v1328 = vor.u32 1.1754944e-38, %v1327
        %v1329 = vsel %vm1326, %v1328, %v1324
        %v1330 = vrcp.pop %v1203
        %v1331 = vmul.f32 %v1203, %v1330
        %v1332 = vsub.f32 1.0, %v1331
        %v1333 = vmul.f32 %v1330, %v1332
        %v1334 = vadd.f32 %v1330, %v1333
        %vm1335 = vweird.f32 %v1203
        %vm1336 = vweird.f32 %v1330
        %vm1337 = vmor %vm1335, %vm1336
        %v1338 = vsel %vm1337, %v1330, %v1334
        %v1339 = vand.u32 2147483647, %v1203
        %vm1340 = vcmp.eq.f32.partialorder %v1339, 8.507059e+37
        %v1341 = vand.u32 %v1203, 2147483648
        %v1342 = vor.u32 1.1754944e-38, %v1341
        %v1343 = vsel %vm1340, %v1342, %v1338
        %v1344 = vrcp.pop %v1206
        %v1345 = vmul.f32 %v1206, %v1344
        %v1346 = vsub.f32 1.0, %v1345
        %v1347 = vmul.f32 %v1344, %v1346
        %v1348 = vadd.f32 %v1344, %v1347
        %vm1349 = vweird.f32 %v1206
        %vm1350 = vweird.f32 %v1344
        %vm1351 = vmor %vm1349, %vm1350
        %v1352 = vsel %vm1351, %v1344, %v1348
        %v1353 = vand.u32 2147483647, %v1206
        %vm1354 = vcmp.eq.f32.partialorder %v1353, 8.507059e+37
        %v1355 = vand.u32 %v1206, 2147483648
        %v1356 = vor.u32 1.1754944e-38, %v1355
        %v1357 = vsel %vm1354, %v1356, %v1352
        %v1358 = vrcp.pop %v1209
        %v1359 = vmul.f32 %v1209, %v1358
        %v1360 = vsub.f32 1.0, %v1359
        %v1361 = vmul.f32 %v1358, %v1360
        %v1362 = vadd.f32 %v1358, %v1361
        %vm1363 = vweird.f32 %v1209
        %vm1364 = vweird.f32 %v1358
        %vm1365 = vmor %vm1363, %vm1364
        %v1366 = vsel %vm1365, %v1358, %v1362
        %v1367 = vand.u32 2147483647, %v1209
        %vm1368 = vcmp.eq.f32.partialorder %v1367, 8.507059e+37
        %v1369 = vand.u32 %v1209, 2147483648
        %v1370 = vor.u32 1.1754944e-38, %v1369
        %v1371 = vsel %vm1368, %v1370, %v1366
        %v1372 = vrcp.pop %v1212
        %v1373 = vmul.f32 %v1212, %v1372
        %v1374 = vsub.f32 1.0, %v1373
        %v1375 = vmul.f32 %v1372, %v1374
        %v1376 = vadd.f32 %v1372, %v1375
        %vm1377 = vweird.f32 %v1212
        %vm1378 = vweird.f32 %v1372
        %vm1379 = vmor %vm1377, %vm1378
        %v1380 = vsel %vm1379, %v1372, %v1376
        %v1381 = vand.u32 2147483647, %v1212
        %vm1382 = vcmp.eq.f32.partialorder %v1381, 8.507059e+37
        %v1383 = vand.u32 %v1212, 2147483648
        %v1384 = vor.u32 1.1754944e-38, %v1383
        %v1385 = vsel %vm1382, %v1384, %v1380
        %v1386 = vrcp.pop %v1215
        %v1387 = vmul.f32 %v1215, %v1386
        %v1388 = vsub.f32 1.0, %v1387
        %v1389 = vmul.f32 %v1386, %v1388
        %v1390 = vadd.f32 %v1386, %v1389
        %vm1391 = vweird.f32 %v1215
        %vm1392 = vweird.f32 %v1386
        %vm1393 = vmor %vm1391, %vm1392
        %v1394 = vsel %vm1393, %v1386, %v1390
        %v1395 = vand.u32 2147483647, %v1215
        %vm1396 = vcmp.eq.f32.partialorder %v1395, 8.507059e+37
        %v1397 = vand.u32 %v1215, 2147483648
        %v1398 = vor.u32 1.1754944e-38, %v1397
        %v1399 = vsel %vm1396, %v1398, %v1394
        %v1400 = vrcp.pop %v1218
        %v1401 = vmul.f32 %v1218, %v1400
        %v1402 = vsub.f32 1.0, %v1401
        %v1403 = vmul.f32 %v1400, %v1402
        %v1404 = vadd.f32 %v1400, %v1403
        %vm1405 = vweird.f32 %v1218
        %vm1406 = vweird.f32 %v1400
        %vm1407 = vmor %vm1405, %vm1406
        %v1408 = vsel %vm1407, %v1400, %v1404
        %v1409 = vand.u32 2147483647, %v1218
        %vm1410 = vcmp.eq.f32.partialorder %v1409, 8.507059e+37
        %v1411 = vand.u32 %v1218, 2147483648
        %v1412 = vor.u32 1.1754944e-38, %v1411
        %v1413 = vsel %vm1410, %v1412, %v1408
        %v1414 = vrcp.pop %v1221
        %v1415 = vmul.f32 %v1221, %v1414
        %v1416 = vsub.f32 1.0, %v1415
        %v1417 = vmul.f32 %v1414, %v1416
        %v1418 = vadd.f32 %v1414, %v1417
        %vm1419 = vweird.f32 %v1221
        %vm1420 = vweird.f32 %v1414
        %vm1421 = vmor %vm1419, %vm1420
        %v1422 = vsel %vm1421, %v1414, %v1418
        %v1423 = vand.u32 2147483647, %v1221
        %vm1424 = vcmp.eq.f32.partialorder %v1423, 8.507059e+37
        %v1425 = vand.u32 %v1221, 2147483648
        %v1426 = vor.u32 1.1754944e-38, %v1425
        %v1427 = vsel %vm1424, %v1426, %v1422
        %v1428 = vrcp.pop %v1224
        %v1429 = vmul.f32 %v1224, %v1428
        %v1430 = vsub.f32 1.0, %v1429
        %v1431 = vmul.f32 %v1428, %v1430
        %v1432 = vadd.f32 %v1428, %v1431
        %vm1433 = vweird.f32 %v1224
        %vm1434 = vweird.f32 %v1428
        %vm1435 = vmor %vm1433, %vm1434
        %v1436 = vsel %vm1435, %v1428, %v1432
        %v1437 = vand.u32 2147483647, %v1224
        %vm1438 = vcmp.eq.f32.partialorder %v1437, 8.507059e+37
        %v1439 = vand.u32 %v1224, 2147483648
        %v1440 = vor.u32 1.1754944e-38, %v1439
        %v1441 = vsel %vm1438, %v1440, %v1436
        %v1442 = vrcp.pop %v1227
        %v1443 = vmul.f32 %v1227, %v1442
        %v1444 = vsub.f32 1.0, %v1443
        %v1445 = vmul.f32 %v1442, %v1444
        %v1446 = vadd.f32 %v1442, %v1445
        %vm1447 = vweird.f32 %v1227
        %vm1448 = vweird.f32 %v1442
        %vm1449 = vmor %vm1447, %vm1448
        %v1450 = vsel %vm1449, %v1442, %v1446
        %v1451 = vand.u32 2147483647, %v1227
        %vm1452 = vcmp.eq.f32.partialorder %v1451, 8.507059e+37
        %v1453 = vand.u32 %v1227, 2147483648
        %v1454 = vor.u32 1.1754944e-38, %v1453
        %v1455 = vsel %vm1452, %v1454, %v1450
        %v1456 = vrcp.pop %v1230
        %v1457 = vmul.f32 %v1230, %v1456
        %v1458 = vsub.f32 1.0, %v1457
        %v1459 = vmul.f32 %v1456, %v1458
        %v1460 = vadd.f32 %v1456, %v1459
        %vm1461 = vweird.f32 %v1230
        %vm1462 = vweird.f32 %v1456
        %vm1463 = vmor %vm1461, %vm1462
        %v1464 = vsel %vm1463, %v1456, %v1460
        %v1465 = vand.u32 2147483647, %v1230
        %vm1466 = vcmp.eq.f32.partialorder %v1465, 8.507059e+37
        %v1467 = vand.u32 %v1230, 2147483648
        %v1468 = vor.u32 1.1754944e-38, %v1467
        %v1469 = vsel %vm1466, %v1468, %v1464
        %v1470 = vrcp.pop %v1233
        %v1471 = vmul.f32 %v1233, %v1470
        %v1472 = vsub.f32 1.0, %v1471
        %v1473 = vmul.f32 %v1470, %v1472
        %v1474 = vadd.f32 %v1470, %v1473
        %vm1475 = vweird.f32 %v1233
        %vm1476 = vweird.f32 %v1470
        %vm1477 = vmor %vm1475, %vm1476
        %v1478 = vsel %vm1477, %v1470, %v1474
        %v1479 = vand.u32 2147483647, %v1233
        %vm1480 = vcmp.eq.f32.partialorder %v1479, 8.507059e+37
        %v1481 = vand.u32 %v1233, 2147483648
        %v1482 = vor.u32 1.1754944e-38, %v1481
        %v1483 = vsel %vm1480, %v1482, %v1478
        %v1484 = vrcp.pop %v1236
        %v1485 = vmul.f32 %v1236, %v1484
        %v1486 = vsub.f32 1.0, %v1485
        %v1487 = vmul.f32 %v1484, %v1486
        %v1488 = vadd.f32 %v1484, %v1487
        %vm1489 = vweird.f32 %v1236
        %vm1490 = vweird.f32 %v1484
        %vm1491 = vmor %vm1489, %vm1490
        %v1492 = vsel %vm1491, %v1484, %v1488
        %v1493 = vand.u32 2147483647, %v1236
        %vm1494 = vcmp.eq.f32.partialorder %v1493, 8.507059e+37
        %v1495 = vand.u32 %v1236, 2147483648
        %v1496 = vor.u32 1.1754944e-38, %v1495
        %v1497 = vsel %vm1494, %v1496, %v1492
        %v1498 = vrcp.pop %v1239
        %v1499 = vmul.f32 %v1239, %v1498
        %v1500 = vsub.f32 1.0, %v1499
        %v1501 = vmul.f32 %v1498, %v1500
        %v1502 = vadd.f32 %v1498, %v1501
        %vm1503 = vweird.f32 %v1239
        %vm1504 = vweird.f32 %v1498
        %vm1505 = vmor %vm1503, %vm1504
        %v1506 = vsel %vm1505, %v1498, %v1502
        %v1507 = vand.u32 2147483647, %v1239
        %vm1508 = vcmp.eq.f32.partialorder %v1507, 8.507059e+37
        %v1509 = vand.u32 %v1239, 2147483648
        %v1510 = vor.u32 1.1754944e-38, %v1509
        %v1511 = vsel %vm1508, %v1510, %v1506
        %v1512 = vrcp.pop %v1242
        %v1513 = vmul.f32 %v1242, %v1512
        %v1514 = vsub.f32 1.0, %v1513
        %v1515 = vmul.f32 %v1512, %v1514
        %v1516 = vadd.f32 %v1512, %v1515
        %vm1517 = vweird.f32 %v1242
        %vm1518 = vweird.f32 %v1512
        %vm1519 = vmor %vm1517, %vm1518
        %v1520 = vsel %vm1519, %v1512, %v1516
        %v1521 = vand.u32 2147483647, %v1242
        %vm1522 = vcmp.eq.f32.partialorder %v1521, 8.507059e+37
        %v1523 = vand.u32 %v1242, 2147483648
        %v1524 = vor.u32 1.1754944e-38, %v1523
        %v1525 = vsel %vm1522, %v1524, %v1520
        %v1526 = vrcp.pop %v1245
        %v1527 = vmul.f32 %v1245, %v1526
        %v1528 = vsub.f32 1.0, %v1527
        %v1529 = vmul.f32 %v1526, %v1528
        %v1530 = vadd.f32 %v1526, %v1529
        %vm1531 = vweird.f32 %v1245
        %vm1532 = vweird.f32 %v1526
        %vm1533 = vmor %vm1531, %vm1532
        %v1534 = vsel %vm1533, %v1526, %v1530
        %v1535 = vand.u32 2147483647, %v1245
        %vm1536 = vcmp.eq.f32.partialorder %v1535, 8.507059e+37
        %v1537 = vand.u32 %v1245, 2147483648
        %v1538 = vor.u32 1.1754944e-38, %v1537
        %v1539 = vsel %vm1536, %v1538, %v1534
        %v1540 = vrcp.pop %v1248
        %v1541 = vmul.f32 %v1248, %v1540
        %v1542 = vsub.f32 1.0, %v1541
        %v1543 = vmul.f32 %v1540, %v1542
        %v1544 = vadd.f32 %v1540, %v1543
        %vm1545 = vweird.f32 %v1248
        %vm1546 = vweird.f32 %v1540
        %vm1547 = vmor %vm1545, %vm1546
        %v1548 = vsel %vm1547, %v1540, %v1544
        %v1549 = vand.u32 2147483647, %v1248
        %vm1550 = vcmp.eq.f32.partialorder %v1549, 8.507059e+37
        %v1551 = vand.u32 %v1248, 2147483648
        %v1552 = vor.u32 1.1754944e-38, %v1551
        %v1553 = vsel %vm1550, %v1552, %v1548
        %v1554 = vrcp.pop %v1251
        %v1555 = vmul.f32 %v1251, %v1554
        %v1556 = vsub.f32 1.0, %v1555
        %v1557 = vmul.f32 %v1554, %v1556
        %v1558 = vadd.f32 %v1554, %v1557
        %vm1559 = vweird.f32 %v1251
        %vm1560 = vweird.f32 %v1554
        %vm1561 = vmor %vm1559, %vm1560
        %v1562 = vsel %vm1561, %v1554, %v1558
        %v1563 = vand.u32 2147483647, %v1251
        %vm1564 = vcmp.eq.f32.partialorder %v1563, 8.507059e+37
        %v1565 = vand.u32 %v1251, 2147483648
        %v1566 = vor.u32 1.1754944e-38, %v1565
        %v1567 = vsel %vm1564, %v1566, %v1562
        %v1568 = vrcp.pop %v1254
        %v1569 = vmul.f32 %v1254, %v1568
        %v1570 = vsub.f32 1.0, %v1569
        %v1571 = vmul.f32 %v1568, %v1570
        %v1572 = vadd.f32 %v1568, %v1571
        %vm1573 = vweird.f32 %v1254
        %vm1574 = vweird.f32 %v1568
        %vm1575 = vmor %vm1573, %vm1574
        %v1576 = vsel %vm1575, %v1568, %v1572
        %v1577 = vand.u32 2147483647, %v1254
        %vm1578 = vcmp.eq.f32.partialorder %v1577, 8.507059e+37
        %v1579 = vand.u32 %v1254, 2147483648
        %v1580 = vor.u32 1.1754944e-38, %v1579
        %v1581 = vsel %vm1578, %v1580, %v1576
        %v1582 = vrcp.pop %v1257
        %v1583 = vmul.f32 %v1257, %v1582
        %v1584 = vsub.f32 1.0, %v1583
        %v1585 = vmul.f32 %v1582, %v1584
        %v1586 = vadd.f32 %v1582, %v1585
        %vm1587 = vweird.f32 %v1257
        %vm1588 = vweird.f32 %v1582
        %vm1589 = vmor %vm1587, %vm1588
        %v1590 = vsel %vm1589, %v1582, %v1586
        %v1591 = vand.u32 2147483647, %v1257
        %vm1592 = vcmp.eq.f32.partialorder %v1591, 8.507059e+37
        %v1593 = vand.u32 %v1257, 2147483648
        %v1594 = vor.u32 1.1754944e-38, %v1593
        %v1595 = vsel %vm1592, %v1594, %v1590
        %v1596 = vrcp.pop %v1260
        %v1597 = vmul.f32 %v1260, %v1596
        %v1598 = vsub.f32 1.0, %v1597
        %v1599 = vmul.f32 %v1596, %v1598
        %v1600 = vadd.f32 %v1596, %v1599
        %vm1601 = vweird.f32 %v1260
        %vm1602 = vweird.f32 %v1596
        %vm1603 = vmor %vm1601, %vm1602
        %v1604 = vsel %vm1603, %v1596, %v1600
        %v1605 = vand.u32 2147483647, %v1260
        %vm1606 = vcmp.eq.f32.partialorder %v1605, 8.507059e+37
        %v1607 = vand.u32 %v1260, 2147483648
        %v1608 = vor.u32 1.1754944e-38, %v1607
        %v1609 = vsel %vm1606, %v1608, %v1604
        %v1610 = vrcp.pop %v1263
        %v1611 = vmul.f32 %v1263, %v1610
        %v1612 = vsub.f32 1.0, %v1611
        %v1613 = vmul.f32 %v1610, %v1612
        %v1614 = vadd.f32 %v1610, %v1613
        %vm1615 = vweird.f32 %v1263
        %vm1616 = vweird.f32 %v1610
        %vm1617 = vmor %vm1615, %vm1616
        %v1618 = vsel %vm1617, %v1610, %v1614
        %v1619 = vand.u32 2147483647, %v1263
        %vm1620 = vcmp.eq.f32.partialorder %v1619, 8.507059e+37
        %v1621 = vand.u32 %v1263, 2147483648
        %v1622 = vor.u32 1.1754944e-38, %v1621
        %v1623 = vsel %vm1620, %v1622, %v1618
        %v1624 = vrcp.pop %v1266
        %v1625 = vmul.f32 %v1266, %v1624
        %v1626 = vsub.f32 1.0, %v1625
        %v1627 = vmul.f32 %v1624, %v1626
        %v1628 = vadd.f32 %v1624, %v1627
        %vm1629 = vweird.f32 %v1266
        %vm1630 = vweird.f32 %v1624
        %vm1631 = vmor %vm1629, %vm1630
        %v1632 = vsel %vm1631, %v1624, %v1628
        %v1633 = vand.u32 2147483647, %v1266
        %vm1634 = vcmp.eq.f32.partialorder %v1633, 8.507059e+37
        %v1635 = vand.u32 %v1266, 2147483648
        %v1636 = vor.u32 1.1754944e-38, %v1635
        %v1637 = vsel %vm1634, %v1636, %v1632
        %v1638 = vrcp.pop %v1269
        %v1639 = vmul.f32 %v1269, %v1638
        %v1640 = vsub.f32 1.0, %v1639
        %v1641 = vmul.f32 %v1638, %v1640
        %v1642 = vadd.f32 %v1638, %v1641
        %vm1643 = vweird.f32 %v1269
        %vm1644 = vweird.f32 %v1638
        %vm1645 = vmor %vm1643, %vm1644
        %v1646 = vsel %vm1645, %v1638, %v1642
        %v1647 = vand.u32 2147483647, %v1269
        %vm1648 = vcmp.eq.f32.partialorder %v1647, 8.507059e+37
        %v1649 = vand.u32 %v1269, 2147483648
        %v1650 = vor.u32 1.1754944e-38, %v1649
        %v1651 = vsel %vm1648, %v1650, %v1646
        %v1652 = vrcp.pop %v1272
        %v1653 = vmul.f32 %v1272, %v1652
        %v1654 = vsub.f32 1.0, %v1653
        %v1655 = vmul.f32 %v1652, %v1654
        %v1656 = vadd.f32 %v1652, %v1655
        %vm1657 = vweird.f32 %v1272
        %vm1658 = vweird.f32 %v1652
        %vm1659 = vmor %vm1657, %vm1658
        %v1660 = vsel %vm1659, %v1652, %v1656
        %v1661 = vand.u32 2147483647, %v1272
        %vm1662 = vcmp.eq.f32.partialorder %v1661, 8.507059e+37
        %v1663 = vand.u32 %v1272, 2147483648
        %v1664 = vor.u32 1.1754944e-38, %v1663
        %v1665 = vsel %vm1662, %v1664, %v1660
        %v1666 = vrcp.pop %v1275
        %v1667 = vmul.f32 %v1275, %v1666
        %v1668 = vsub.f32 1.0, %v1667
        %v1669 = vmul.f32 %v1666, %v1668
        %v1670 = vadd.f32 %v1666, %v1669
        %vm1671 = vweird.f32 %v1275
        %vm1672 = vweird.f32 %v1666
        %vm1673 = vmor %vm1671, %vm1672
        %v1674 = vsel %vm1673, %v1666, %v1670
        %v1675 = vand.u32 2147483647, %v1275
        %vm1676 = vcmp.eq.f32.partialorder %v1675, 8.507059e+37
        %v1677 = vand.u32 %v1275, 2147483648
        %v1678 = vor.u32 1.1754944e-38, %v1677
        %v1679 = vsel %vm1676, %v1678, %v1674
        %v1680 = vrcp.pop %v1278
        %v1681 = vmul.f32 %v1278, %v1680
        %v1682 = vsub.f32 1.0, %v1681
        %v1683 = vmul.f32 %v1680, %v1682
        %v1684 = vadd.f32 %v1680, %v1683
        %vm1685 = vweird.f32 %v1278
        %vm1686 = vweird.f32 %v1680
        %vm1687 = vmor %vm1685, %vm1686
        %v1688 = vsel %vm1687, %v1680, %v1684
        %v1689 = vand.u32 2147483647, %v1278
        %vm1690 = vcmp.eq.f32.partialorder %v1689, 8.507059e+37
        %v1691 = vand.u32 %v1278, 2147483648
        %v1692 = vor.u32 1.1754944e-38, %v1691
        %v1693 = vsel %vm1690, %v1692, %v1688
        %v1694 = vrcp.pop %v1281
        %v1695 = vmul.f32 %v1281, %v1694
        %v1696 = vsub.f32 1.0, %v1695
        %v1697 = vmul.f32 %v1694, %v1696
        %v1698 = vadd.f32 %v1694, %v1697
        %vm1699 = vweird.f32 %v1281
        %vm1700 = vweird.f32 %v1694
        %vm1701 = vmor %vm1699, %vm1700
        %v1702 = vsel %vm1701, %v1694, %v1698
        %v1703 = vand.u32 2147483647, %v1281
        %vm1704 = vcmp.eq.f32.partialorder %v1703, 8.507059e+37
        %v1705 = vand.u32 %v1281, 2147483648
        %v1706 = vor.u32 1.1754944e-38, %v1705
        %v1707 = vsel %vm1704, %v1706, %v1702
        %v1708 = vrcp.pop %v1284
        %v1709 = vmul.f32 %v1284, %v1708
        %v1710 = vsub.f32 1.0, %v1709
        %v1711 = vmul.f32 %v1708, %v1710
        %v1712 = vadd.f32 %v1708, %v1711
        %vm1713 = vweird.f32 %v1284
        %vm1714 = vweird.f32 %v1708
        %vm1715 = vmor %vm1713, %vm1714
        %v1716 = vsel %vm1715, %v1708, %v1712
        %v1717 = vand.u32 2147483647, %v1284
        %vm1718 = vcmp.eq.f32.partialorder %v1717, 8.507059e+37
        %v1719 = vand.u32 %v1284, 2147483648
        %v1720 = vor.u32 1.1754944e-38, %v1719
        %v1721 = vsel %vm1718, %v1720, %v1716
        %v1722 = vrcp.pop %v1287
        %v1723 = vmul.f32 %v1287, %v1722
        %v1724 = vsub.f32 1.0, %v1723
        %v1725 = vmul.f32 %v1722, %v1724
        %v1726 = vadd.f32 %v1722, %v1725
        %vm1727 = vweird.f32 %v1287
        %vm1728 = vweird.f32 %v1722
        %vm1729 = vmor %vm1727, %vm1728
        %v1730 = vsel %vm1729, %v1722, %v1726
        %v1731 = vand.u32 2147483647, %v1287
        %vm1732 = vcmp.eq.f32.partialorder %v1731, 8.507059e+37
        %v1733 = vand.u32 %v1287, 2147483648
        %v1734 = vor.u32 1.1754944e-38, %v1733
        %v1735 = vsel %vm1732, %v1734, %v1730
        %v1736 = vmul.f32 %v1065, %v1301
        %v1737 = vmul.f32 %v1067, %v1301
        %v1738 = vmul.f32 %v1069, %v1315
        %v1739 = vmul.f32 %v1071, %v1315
        %v1740 = vmul.f32 %v1073, %v1329
        %v1741 = vmul.f32 %v1075, %v1329
        %v1742 = vmul.f32 %v1077, %v1343
        %v1743 = vmul.f32 %v1079, %v1343
        %v1744 = vmul.f32 %v1081, %v1357
        %v1745 = vmul.f32 %v1083, %v1357
        %v1746 = vmul.f32 %v1085, %v1371
        %v1747 = vmul.f32 %v1087, %v1371
        %v1748 = vmul.f32 %v1089, %v1385
        %v1749 = vmul.f32 %v1091, %v1385
        %v1750 = vmul.f32 %v1093, %v1399
        %v1751 = vmul.f32 %v1095, %v1399
        %v1752 = vmul.f32 %v1097, %v1413
        %v1753 = vmul.f32 %v1099, %v1413
        %v1754 = vmul.f32 %v1101, %v1427
        %v1755 = vmul.f32 %v1103, %v1427
        %v1756 = vmul.f32 %v1105, %v1441
        %v1757 = vmul.f32 %v1107, %v1441
        %v1758 = vmul.f32 %v1109, %v1455
        %v1759 = vmul.f32 %v1111, %v1455
        %v1760 = vmul.f32 %v1113, %v1469
        %v1761 = vmul.f32 %v1115, %v1469
        %v1762 = vmul.f32 %v1117, %v1483
        %v1763 = vmul.f32 %v1119, %v1483
        %v1764 = vmul.f32 %v1121, %v1497
        %v1765 = vmul.f32 %v1123, %v1497
        %v1766 = vmul.f32 %v1125, %v1511
        %v1767 = vmul.f32 %v1127, %v1511
        %v1768 = vmul.f32 %v1129, %v1525
        %v1769 = vmul.f32 %v1131, %v1525
        %v1770 = vmul.f32 %v1133, %v1539
        %v1771 = vmul.f32 %v1135, %v1539
        %v1772 = vmul.f32 %v1137, %v1553
        %v1773 = vmul.f32 %v1139, %v1553
        %v1774 = vmul.f32 %v1141, %v1567
        %v1775 = vmul.f32 %v1143, %v1567
        %v1776 = vmul.f32 %v1145, %v1581
        %v1777 = vmul.f32 %v1147, %v1581
        %v1778 = vmul.f32 %v1149, %v1595
        %v1779 = vmul.f32 %v1151, %v1595
        %v1780 = vmul.f32 %v1153, %v1609
        %v1781 = vmul.f32 %v1155, %v1609
        %v1782 = vmul.f32 %v1157, %v1623
        %v1783 = vmul.f32 %v1159, %v1623
        %v1784 = vmul.f32 %v1161, %v1637
        %v1785 = vmul.f32 %v1163, %v1637
        %v1786 = vmul.f32 %v1165, %v1651
        %v1787 = vmul.f32 %v1167, %v1651
        %v1788 = vmul.f32 %v1169, %v1665
        %v1789 = vmul.f32 %v1171, %v1665
        %v1790 = vmul.f32 %v1173, %v1679
        %v1791 = vmul.f32 %v1175, %v1679
        %v1792 = vmul.f32 %v1177, %v1693
        %v1793 = vmul.f32 %v1179, %v1693
        %v1794 = vmul.f32 %v1181, %v1707
        %v1795 = vmul.f32 %v1183, %v1707
        %v1796 = vmul.f32 %v1185, %v1721
        %v1797 = vmul.f32 %v1187, %v1721
        %v1798 = vmul.f32 %v1189, %v1735
        %v1799 = vmul.f32 %v1191, %v1735
        %s1800 = smul.u32 %s23, 256
        %s1801 = sshra.s32 %s1800, 7
        %s1802 = sand.u32 %s1800, 127
        %s1803 = smul.addr %s1801, 8
        %s1804 = scalar_lea.vmem [#allocation2], %s1803
        %v1805 = vld [vmem:[%s1804 + $0x20] sm:$0xff]
        %v1806 = vld [vmem:[%s1804 + $0x28] sm:$0xff]
        %v1807 = vld [vmem:[#allocation3] sm:$0xff]
        %v1808 = vld [vmem:[#allocation3 + $0x8] sm:$0xff]
        %1809 = vmatpush.msra.mxu0 %v1766
        %1810 = vmatpush.msra.mxu0 %v1764
        %1811 = vmatpush.msra.mxu0 %v1762
        %1812 = vmatpush.msra.mxu0 %v1760
        %1813 = vmatpush.msra.mxu0 %v1758
        %1814 = vmatpush.msra.mxu0 %v1756
        %1815 = vmatpush.msra.mxu0 %v1754
        %1816 = vmatpush.msra.mxu0 %v1752
        %1817 = vmatpush.msra.mxu0 %v1750
        %1818 = vmatpush.msra.mxu0 %v1748
        %1819 = vmatpush.msra.mxu0 %v1746
        %1820 = vmatpush.msra.mxu0 %v1744
        %1821 = vmatpush.msra.mxu0 %v1742
        %1822 = vmatpush.msra.mxu0 %v1740
        %1823 = vmatpush.msra.mxu0 %v1738
        %1824 = vmatpush.msra.mxu0 %v1736
        %1825 = vmatmul.f32.gmra.mxu0 %v1805
        %v1826 = vpop.f32.mrf.mxu0
        %v1827 = vadd.f32 0.0, %v1826
        %1828 = vdwg.mxu0
        %1829 = vmatpush.msra.mxu0 %v1798
        %1830 = vmatpush.msra.mxu0 %v1796
        %1831 = vmatpush.msra.mxu0 %v1794
        %1832 = vmatpush.msra.mxu0 %v1792
        %1833 = vmatpush.msra.mxu0 %v1790
        %1834 = vmatpush.msra.mxu0 %v1788
        %1835 = vmatpush.msra.mxu0 %v1786
        %1836 = vmatpush.msra.mxu0 %v1784
        %1837 = vmatpush.msra.mxu0 %v1782
        %1838 = vmatpush.msra.mxu0 %v1780
        %1839 = vmatpush.msra.mxu0 %v1778
        %1840 = vmatpush.msra.mxu0 %v1776
        %1841 = vmatpush.msra.mxu0 %v1774
        %1842 = vmatpush.msra.mxu0 %v1772
        %1843 = vmatpush.msra.mxu0 %v1770
        %1844 = vmatpush.msra.mxu0 %v1768
        %1845 = vmatmul.f32.gmra.mxu0 %v1806
        %v1846 = vpop.f32.mrf.mxu0
        %v1847 = vadd.f32 %v1827, %v1846
        %1848 = vdwg.mxu0
        %1849 = vmatpush.msra.mxu0 %v1767
        %1850 = vmatpush.msra.mxu0 %v1765
        %1851 = vmatpush.msra.mxu0 %v1763
        %1852 = vmatpush.msra.mxu0 %v1761
        %1853 = vmatpush.msra.mxu0 %v1759
        %1854 = vmatpush.msra.mxu0 %v1757
        %1855 = vmatpush.msra.mxu0 %v1755
        %1856 = vmatpush.msra.mxu0 %v1753
        %1857 = vmatpush.msra.mxu0 %v1751
        %1858 = vmatpush.msra.mxu0 %v1749
        %1859 = vmatpush.msra.mxu0 %v1747
        %1860 = vmatpush.msra.mxu0 %v1745
        %1861 = vmatpush.msra.mxu0 %v1743
        %1862 = vmatpush.msra.mxu0 %v1741
        %1863 = vmatpush.msra.mxu0 %v1739
        %1864 = vmatpush.msra.mxu0 %v1737
        %1865 = vmatmul.f32.gmra.mxu0 %v1805
        %v1866 = vpop.f32.mrf.mxu0
        %v1867 = vadd.f32 0.0, %v1866
        %1868 = vdwg.mxu0
        %1869 = vmatpush.msra.mxu0 %v1799
        %1870 = vmatpush.msra.mxu0 %v1797
        %1871 = vmatpush.msra.mxu0 %v1795
        %1872 = vmatpush.msra.mxu0 %v1793
        %1873 = vmatpush.msra.mxu0 %v1791
        %1874 = vmatpush.msra.mxu0 %v1789
        %1875 = vmatpush.msra.mxu0 %v1787
        %1876 = vmatpush.msra.mxu0 %v1785
        %1877 = vmatpush.msra.mxu0 %v1783
        %1878 = vmatpush.msra.mxu0 %v1781
        %1879 = vmatpush.msra.mxu0 %v1779
        %1880 = vmatpush.msra.mxu0 %v1777
        %1881 = vmatpush.msra.mxu0 %v1775
        %1882 = vmatpush.msra.mxu0 %v1773
        %1883 = vmatpush.msra.mxu0 %v1771
        %1884 = vmatpush.msra.mxu0 %v1769
        %1885 = vmatmul.f32.gmra.mxu0 %v1806
        %v1886 = vpop.f32.mrf.mxu0
        %v1887 = vadd.f32 %v1867, %v1886
        %1888 = vdwg.mxu0
        %v1889 = vadd.f32 %v1807, %v1847
        %v1890 = vadd.f32 %v1808, %v1887
        %1891 = vst [vmem:[#allocation3] sm:$0xff] %v1889
        %1892 = vst [vmem:[#allocation3 + $0x8] sm:$0xff] %v1890
        // Predicated region
        $region41: #{tpu_custom_call.1} parent=31 // pred_check
          %p1893 = pneg %p208
        $region42: #{tpu_custom_call.1} parent=31 // pred_check_branch
          %1895 = sbr.rel (%p1893) target = $region44
        $region43: #{tpu_custom_call.1} parent=31 // pred_region
          %v1896 = vld [vmem:[#allocation3] sm:$0xff]
          %v1897 = vld [vmem:[#allocation3 + $0x8] sm:$0xff]
          %v1898 = vld [vmem:[%s206] sm:$0xff]
          %v1899 = vld [vmem:[%s206 + $0x8] sm:$0xff]
          %v1900 = vadd.f32 %v1896, %v1898
          %v1901 = vadd.f32 %v1897, %v1899
          %1902 = vst [vmem:[%s201] sm:$0xff] %v1900
          %1903 = vst [vmem:[%s201 + $0x8] sm:$0xff] %v1901
        $region44: #{tpu_custom_call.1} parent=31 // pred_fallthru
          _
        %s1904 = sand.u32 %s111, 1
        %s1905 = scalar_lea.sflag [#allocation6], %s1904
        %s1906 = sand.u32 %s111, 1
        %s1907 = smul.addr %s1906, 16
        %s1908 = scalar_lea.vmem [#allocation7], %s1907
        // Predicated region
        $region45: #{tpu_custom_call.1} parent=31 // pred_check
          %p1909 = pneg %p121
        $region46: #{tpu_custom_call.1} parent=31 // pred_check_branch
          %1911 = sbr.rel (%p1909) target = $region48
        $region47: #{tpu_custom_call.1} parent=31 // pred_region
          %1913 = vsyncadd %s1905, 0
          %s1914 = smul.addr %s22, 2
          %s1915 = smul.addr %s1914, 8
          %s1916 = scalar_lea.hbm %s3, %s1915
          %s1918 = sshll.u32 %s1908, 4
          %s1919 = int_to_ptr.vmem [resolvable:$true] %s1918
          %s1920 = sshll.u32 %s1916, 4
          %s1921 = int_to_ptr.hbm [resolvable:$true] %s1920
          %1923 = dma.vmem_to_hbm [thread:$0]  %s1919, 256, %s1921, %s1905
        $region48: #{tpu_custom_call.1} parent=31 // pred_fallthru
          _
      $region32: #{tpu_custom_call.1} parent=5 // pred_fallthru
        _
      %p1924 = scmp.le.s32.totalorder 2, %s13
      // Predicated region
      $region49: #{tpu_custom_call.1} parent=5 // pred_check
        %p1925 = pneg %p1924
      $region50: #{tpu_custom_call.1} parent=5 // pred_check_branch
        %1927 = sbr.rel (%p1925) target = $region52
      $region51: #{tpu_custom_call.1} parent=5 // pred_region
        %s1928 = ssub.s32 %s13, 2
        // Predicated region
        $region53: #{tpu_custom_call.1} parent=51 // pred_check
          %p1929 = pneg %p127
        $region54: #{tpu_custom_call.1} parent=51 // pred_check_branch
          %1931 = sbr.rel (%p1929) target = $region56
        $region55: #{tpu_custom_call.1} parent=51 // pred_region
          %s1932 = sand.u32 %s112, 1
          %s1933 = scalar_lea.sflag [#allocation6], %s1932
          %s1934 = sand.u32 %s112, 1
          %s1935 = smul.addr %s1934, 16
          %s1936 = scalar_lea.vmem [#allocation7], %s1935
          %1938 = dma.done %s1933, 256
        $region56: #{tpu_custom_call.1} parent=51 // pred_fallthru
          _
      $region52: #{tpu_custom_call.1} parent=5 // pred_fallthru
        _
    $region6: #{tpu_custom_call.1} parent=1 // loop_footer
      %s17 = sadd.s32 1, %s13
    $region7: #{tpu_custom_call.1} parent=1 // loop_footer_branch
      %12 = sbr.rel target = $region3
    $region8: #{tpu_custom_call.1} parent=1 // loop_exit
      _
    %1939 = vsyncpa [#allocation5], 1
    %s1940 = scalar_lea.sflag [#allocation5], 1
    %1941 = vsyncpa %s1940, 1
    %1942 = vsyncpa [#allocation6], 1
    %s1943 = scalar_lea.sflag [#allocation6], 1
    %1944 = vsyncpa %s1943, 1

</llo_original>
